<compile_context>
chip_gen: v6e
topology: v6e:2x2x1
jax: 0.10.0
libtpu: 0.0.40
codegen_flags: <defaults>
</compile_context>

<pallas_src>
import functools

import jax
import jax.numpy as jnp
from jax.experimental import pallas as pl
from jax.experimental.pallas import tpu as pltpu


def _eff_attn3d_kernel(x_ref, wk_ref, bk_ref, wq_ref, bq_ref, wv_ref, bv_ref,
                       wr_ref, br_ref, o_ref, *, head_count):
    # x_ref block: (1, C_in, S) -- channels on sublanes, spatial on lanes.
    x = x_ref[0]
    xf = x.astype(jnp.float32)                                        # [C_in, S]

    # 1x1x1 convs == channel matmuls (contract C_in), outputs stay lane-dense over S.
    keys = jnp.dot(wk_ref[...], xf, preferred_element_type=jnp.float32) + bk_ref[...]
    queries = jnp.dot(wq_ref[...], xf, preferred_element_type=jnp.float32) + bq_ref[...]
    values = jnp.dot(wv_ref[...], xf, preferred_element_type=jnp.float32) + bv_ref[...]

    ck = keys.shape[0]
    cv = values.shape[0]
    hkc = ck // head_count
    hvc = cv // head_count

    heads = []
    for h in range(head_count):                      # static unroll; head_count is small
        kh = keys[h * hkc:(h + 1) * hkc, :]          # [hkc, S]
        qh = queries[h * hkc:(h + 1) * hkc, :]       # [hkc, S]
        vh = values[h * hvc:(h + 1) * hvc, :]        # [hvc, S]

        # softmax over the spatial (lane) axis.
        ke = jnp.exp(kh - jnp.max(kh, axis=1, keepdims=True))
        ksm = ke / jnp.sum(ke, axis=1, keepdims=True)

        # softmax over the head's key channels (sublane axis).
        qe = jnp.exp(qh - jnp.max(qh, axis=0, keepdims=True))
        qsm = qe / jnp.sum(qe, axis=0, keepdims=True)

        # context^T = V_h @ K_h^T : contract the spatial axis directly (no transposes).
        ctx_t = jax.lax.dot_general(
            vh, ksm, (((1,), (1,)), ((), ())),
            preferred_element_type=jnp.float32)      # [hvc, hkc]

        # attended = context^T @ Q_h
        heads.append(jnp.dot(ctx_t, qsm, preferred_element_type=jnp.float32))  # [hvc, S]

    agg = jnp.concatenate(heads, axis=0)             # [Cv, S]
    reproj = jnp.dot(wr_ref[...], agg, preferred_element_type=jnp.float32) + br_ref[...]
    o_ref[0] = (reproj + xf).astype(o_ref.dtype)     # fused residual add


def efficient_attention_3d(x, wk, bk, wq, bq, wv, bv, wr, br, *, head_count):
    """x: [N, C_in, D, H, W] (NCDHW, like PyTorch).
    wk/wq: [Ck, C_in], bk/bq: [Ck], wv: [Cv, C_in], bv: [Cv], wr: [C_in, Cv], br: [C_in]."""
    N, C_in, Dd, Hh, Ww = x.shape
    S = Dd * Hh * Ww
    Ck = wk.shape[0]
    Cv = wv.shape[0]
    assert Ck % head_count == 0 and Cv % head_count == 0

    # Free reshape (contiguous) -- no transpose, no extra HBM traffic.
    xs = x.reshape(N, C_in, S)

    f32 = jnp.float32
    wk2, wq2, wv2, wr2 = (w.astype(f32) for w in (wk, wq, wv, wr))
    bk2 = bk.reshape(Ck, 1).astype(f32)
    bq2 = bq.reshape(Ck, 1).astype(f32)
    bv2 = bv.reshape(Cv, 1).astype(f32)
    br2 = br.reshape(C_in, 1).astype(f32)

    # VMEM budget: double-buffered in/out [C_in,S] tiles + resident weights + f32 temps.
    itemsize = jnp.dtype(x.dtype).itemsize
    per_step = (4 * C_in * S * itemsize                      # 2x in + 2x out buffers
                + (2 * Ck + 2 * Cv + 2 * C_in) * S * 4        # K, Q, V, agg, reproj temps
                + 4 * (2 * Ck * C_in + 2 * Cv * C_in + 2 * Ck + Cv + C_in))
    vmem_limit = int(min(48 * 2**20, max(4 * per_step, 16 * 2**20)))

    kernel = functools.partial(_eff_attn3d_kernel, head_count=head_count)

    out = pl.pallas_call(
        kernel,
        out_shape=jax.ShapeDtypeStruct((N, C_in, S), x.dtype),
        grid_spec=pltpu.PrefetchScalarGridSpec(
            num_scalar_prefetch=0,
            grid=(N,),
            in_specs=[
                pl.BlockSpec((1, C_in, S), lambda n: (n, 0, 0)),   # x slab for batch n
                pl.BlockSpec((Ck, C_in), lambda n: (0, 0)),        # wk (resident)
                pl.BlockSpec((Ck, 1), lambda n: (0, 0)),           # bk
                pl.BlockSpec((Ck, C_in), lambda n: (0, 0)),        # wq
                pl.BlockSpec((Ck, 1), lambda n: (0, 0)),           # bq
                pl.BlockSpec((Cv, C_in), lambda n: (0, 0)),        # wv
                pl.BlockSpec((Cv, 1), lambda n: (0, 0)),           # bv
                pl.BlockSpec((C_in, Cv), lambda n: (0, 0)),        # wr
                pl.BlockSpec((C_in, 1), lambda n: (0, 0)),         # br
            ],
            out_specs=pl.BlockSpec((1, C_in, S), lambda n: (n, 0, 0)),
        ),
        compiler_params=pltpu.CompilerParams(
            dimension_semantics=("parallel",),
            vmem_limit_bytes=vmem_limit,
        ),
    )(xs, wk2, bk2, wq2, bq2, wv2, bv2, wr2, br2)

    return out.reshape(N, C_in, Dd, Hh, Ww)


def _reference(x, wk, bk, wq, bq, wv, bv, wr, br, head_count):
    N, C, Dd, Hh, Ww = x.shape
    S = Dd * Hh * Ww
    xs = x.reshape(N, C, S).astype(jnp.float32)
    keys = jnp.einsum("kc,ncs->nks", wk, xs) + bk[None, :, None]
    queries = jnp.einsum("kc,ncs->nks", wq, xs) + bq[None, :, None]
    values = jnp.einsum("vc,ncs->nvs", wv, xs) + bv[None, :, None]
    Ck, Cv = wk.shape[0], wv.shape[0]
    hkc, hvc = Ck // head_count, Cv // head_count
    outs = []
    for i in range(head_count):
        k = jax.nn.softmax(keys[:, i * hkc:(i + 1) * hkc, :], axis=2)
        q = jax.nn.softmax(queries[:, i * hkc:(i + 1) * hkc, :], axis=1)
        v = values[:, i * hvc:(i + 1) * hvc, :]
        ctx = jnp.einsum("nks,nvs->nkv", k, v)
        outs.append(jnp.einsum("nkv,nks->nvs", ctx, q))
    agg = jnp.concatenate(outs, axis=1)
    reproj = jnp.einsum("ov,nvs->nos", wr, agg) + br[None, :, None]
    return (reproj + xs).astype(x.dtype).reshape(N, C, Dd, Hh, Ww)


if __name__ == "__main__":
    key = jax.random.PRNGKey(0)

    # Small shapes consistent with the module: batch=2, in_channels=16, spatial 8x8x8,
    # key_channels=8, head_count=2 (-> 4 key ch / head), value_channels=32 (-> 16 / head).
    N, C_in = 2, 16
    Dd, Hh, Ww = 8, 8, 8
    Ck, heads, Cv = 8, 2, 32

    ks = jax.random.split(key, 9)
    x = jax.random.normal(ks[0], (N, C_in, Dd, Hh, Ww), dtype=jnp.float32)
    wk = jax.random.normal(ks[1], (Ck, C_in), dtype=jnp.float32) * 0.25
    bk = jax.random.normal(ks[2], (Ck,), dtype=jnp.float32) * 0.1
    wq = jax.random.normal(ks[3], (Ck, C_in), dtype=jnp.float32) * 0.25
    bq = jax.random.normal(ks[4], (Ck,), dtype=jnp.float32) * 0.1
    wv = jax.random.normal(ks[5], (Cv, C_in), dtype=jnp.float32) * 0.25
    bv = jax.random.normal(ks[6], (Cv,), dtype=jnp.float32) * 0.1
    wr = jax.random.normal(ks[7], (C_in, Cv), dtype=jnp.float32) * 0.25
    br = jax.random.normal(ks[8], (C_in,), dtype=jnp.float32) * 0.1

    out = efficient_attention_3d(x, wk, bk, wq, bq, wv, bv, wr, br, head_count=heads)
    out = jax.block_until_ready(out)

    ref = _reference(x, wk, bk, wq, bq, wv, bv, wr, br, heads)
    assert out.shape == (N, C_in, Dd, Hh, Ww)
    err = jnp.max(jnp.abs(out - ref))
    assert jnp.allclose(out, ref, atol=2e-4, rtol=2e-4), f"mismatch vs reference: {err}"

    print("KERNEL_OK")
</pallas_src>

<mosaic_0001>
module attributes {stable_mosaic.version = 11 : i64} {
  func.func @_eff_attn3d_kernel(%arg0: i32, %arg1: memref<1x16x512xf32, #tpu.memory_space<vmem>>, %arg2: memref<8x16xf32, #tpu.memory_space<vmem>>, %arg3: memref<8x1xf32, #tpu.memory_space<vmem>>, %arg4: memref<8x16xf32, #tpu.memory_space<vmem>>, %arg5: memref<8x1xf32, #tpu.memory_space<vmem>>, %arg6: memref<32x16xf32, #tpu.memory_space<vmem>>, %arg7: memref<32x1xf32, #tpu.memory_space<vmem>>, %arg8: memref<16x32xf32, #tpu.memory_space<vmem>>, %arg9: memref<16x1xf32, #tpu.memory_space<vmem>>, %arg10: memref<1x16x512xf32, #tpu.memory_space<vmem>>) attributes {dimension_semantics = [#tpu.dimension_semantics<parallel>], iteration_bounds = array<i64: 2>, scalar_prefetch = 0 : i64, scratch_operands = 0 : i64, tpu.core_type = #tpu.core_type<tc>, window_params = [{transform_indices = @transform_0, window_bounds = array<i64: 1, 16, 512>}, {pipeline_mode = #tpu.pipeline_mode<synchronous>, transform_indices = @transform_1, window_bounds = array<i64: 8, 16>}, {pipeline_mode = #tpu.pipeline_mode<synchronous>, transform_indices = @transform_2, window_bounds = array<i64: 8, 1>}, {pipeline_mode = #tpu.pipeline_mode<synchronous>, transform_indices = @transform_3, window_bounds = array<i64: 8, 16>}, {pipeline_mode = #tpu.pipeline_mode<synchronous>, transform_indices = @transform_4, window_bounds = array<i64: 8, 1>}, {pipeline_mode = #tpu.pipeline_mode<synchronous>, transform_indices = @transform_5, window_bounds = array<i64: 32, 16>}, {pipeline_mode = #tpu.pipeline_mode<synchronous>, transform_indices = @transform_6, window_bounds = array<i64: 32, 1>}, {pipeline_mode = #tpu.pipeline_mode<synchronous>, transform_indices = @transform_7, window_bounds = array<i64: 16, 32>}, {pipeline_mode = #tpu.pipeline_mode<synchronous>, transform_indices = @transform_8, window_bounds = array<i64: 16, 1>}, {transform_indices = @transform_9, window_bounds = array<i64: 1, 16, 512>}]} {
    %c0 = arith.constant 0 : index
    %c0_0 = arith.constant 0 : index
    %c0_1 = arith.constant 0 : index
    %0 = vector.load %arg1[%c0, %c0_0, %c0_1] : memref<1x16x512xf32, #tpu.memory_space<vmem>>, vector<1x16x512xf32>
    %1 = vector.shape_cast %0 : vector<1x16x512xf32> to vector<16x512xf32>
    %c0_2 = arith.constant 0 : index
    %c0_3 = arith.constant 0 : index
    %2 = vector.load %arg2[%c0_2, %c0_3] : memref<8x16xf32, #tpu.memory_space<vmem>>, vector<8x16xf32>
    %cst = arith.constant dense<0.000000e+00> : vector<8x512xf32>
    %3 = tpu.matmul %2, %1, %cst {dimension_numbers = #tpu.dot_dimension_numbers<[1], [0], [0], [1], [0, 0, 1, 1], [], []>} : vector<8x16xf32>, vector<16x512xf32>, vector<8x512xf32> -> vector<8x512xf32>
    %c0_4 = arith.constant 0 : index
    %c0_5 = arith.constant 0 : index
    %4 = vector.load %arg3[%c0_4, %c0_5] : memref<8x1xf32, #tpu.memory_space<vmem>>, vector<8x1xf32>
    %5 = vector.broadcast %4 : vector<8x1xf32> to vector<8x512xf32>
    %6 = arith.addf %3, %5 : vector<8x512xf32>
    %c0_6 = arith.constant 0 : index
    %c0_7 = arith.constant 0 : index
    %7 = vector.load %arg4[%c0_6, %c0_7] : memref<8x16xf32, #tpu.memory_space<vmem>>, vector<8x16xf32>
    %cst_8 = arith.constant dense<0.000000e+00> : vector<8x512xf32>
    %8 = tpu.matmul %7, %1, %cst_8 {dimension_numbers = #tpu.dot_dimension_numbers<[1], [0], [0], [1], [0, 0, 1, 1], [], []>} : vector<8x16xf32>, vector<16x512xf32>, vector<8x512xf32> -> vector<8x512xf32>
    %c0_9 = arith.constant 0 : index
    %c0_10 = arith.constant 0 : index
    %9 = vector.load %arg5[%c0_9, %c0_10] : memref<8x1xf32, #tpu.memory_space<vmem>>, vector<8x1xf32>
    %10 = vector.broadcast %9 : vector<8x1xf32> to vector<8x512xf32>
    %11 = arith.addf %8, %10 : vector<8x512xf32>
    %c0_11 = arith.constant 0 : index
    %c0_12 = arith.constant 0 : index
    %12 = vector.load %arg6[%c0_11, %c0_12] : memref<32x16xf32, #tpu.memory_space<vmem>>, vector<32x16xf32>
    %cst_13 = arith.constant dense<0.000000e+00> : vector<32x512xf32>
    %13 = tpu.matmul %12, %1, %cst_13 {dimension_numbers = #tpu.dot_dimension_numbers<[1], [0], [0], [1], [0, 0, 1, 1], [], []>} : vector<32x16xf32>, vector<16x512xf32>, vector<32x512xf32> -> vector<32x512xf32>
    %c0_14 = arith.constant 0 : index
    %c0_15 = arith.constant 0 : index
    %14 = vector.load %arg7[%c0_14, %c0_15] : memref<32x1xf32, #tpu.memory_space<vmem>>, vector<32x1xf32>
    %15 = vector.broadcast %14 : vector<32x1xf32> to vector<32x512xf32>
    %16 = arith.addf %13, %15 : vector<32x512xf32>
    %17 = vector.extract_strided_slice %6 {offsets = [0, 0], sizes = [4, 512], strides = [1, 1]} : vector<8x512xf32> to vector<4x512xf32>
    %18 = vector.extract_strided_slice %11 {offsets = [0, 0], sizes = [4, 512], strides = [1, 1]} : vector<8x512xf32> to vector<4x512xf32>
    %19 = vector.extract_strided_slice %16 {offsets = [0, 0], sizes = [16, 512], strides = [1, 1]} : vector<32x512xf32> to vector<16x512xf32>
    %cst_16 = arith.constant dense<0xFF800000> : vector<4xf32>
    %20 = vector.multi_reduction <maximumf>, %17, %cst_16 [1] : vector<4x512xf32> to vector<4xf32>
    %21 = vector.shape_cast %20 : vector<4xf32> to vector<4x1xf32>
    %22 = vector.broadcast %21 : vector<4x1xf32> to vector<4x512xf32>
    %23 = arith.subf %17, %22 : vector<4x512xf32>
    %24 = math.exp %23 : vector<4x512xf32>
    %cst_17 = arith.constant dense<0.000000e+00> : vector<4xf32>
    %25 = vector.multi_reduction <add>, %24, %cst_17 [1] : vector<4x512xf32> to vector<4xf32>
    %26 = vector.shape_cast %25 : vector<4xf32> to vector<4x1xf32>
    %27 = vector.broadcast %26 : vector<4x1xf32> to vector<4x512xf32>
    %28 = arith.divf %24, %27 : vector<4x512xf32>
    %cst_18 = arith.constant dense<0xFF800000> : vector<512xf32>
    %29 = vector.multi_reduction <maximumf>, %18, %cst_18 [0] : vector<4x512xf32> to vector<512xf32>
    %30 = vector.shape_cast %29 : vector<512xf32> to vector<1x512xf32>
    %31 = vector.broadcast %30 : vector<1x512xf32> to vector<4x512xf32>
    %32 = arith.subf %18, %31 : vector<4x512xf32>
    %33 = math.exp %32 : vector<4x512xf32>
    %cst_19 = arith.constant dense<0.000000e+00> : vector<512xf32>
    %34 = vector.multi_reduction <add>, %33, %cst_19 [0] : vector<4x512xf32> to vector<512xf32>
    %35 = vector.shape_cast %34 : vector<512xf32> to vector<1x512xf32>
    %36 = vector.broadcast %35 : vector<1x512xf32> to vector<4x512xf32>
    %37 = arith.divf %33, %36 : vector<4x512xf32>
    %cst_20 = arith.constant dense<0.000000e+00> : vector<16x4xf32>
    %38 = tpu.matmul %19, %28, %cst_20 {dimension_numbers = #tpu.dot_dimension_numbers<[1], [1], [0], [0], [0, 0, 1, 0], [], []>} : vector<16x512xf32>, vector<4x512xf32>, vector<16x4xf32> -> vector<16x4xf32>
    %cst_21 = arith.constant dense<0.000000e+00> : vector<16x512xf32>
    %39 = tpu.matmul %38, %37, %cst_21 {dimension_numbers = #tpu.dot_dimension_numbers<[1], [0], [0], [1], [0, 0, 1, 1], [], []>} : vector<16x4xf32>, vector<4x512xf32>, vector<16x512xf32> -> vector<16x512xf32>
    %40 = vector.extract_strided_slice %6 {offsets = [4, 0], sizes = [4, 512], strides = [1, 1]} : vector<8x512xf32> to vector<4x512xf32>
    %41 = vector.extract_strided_slice %11 {offsets = [4, 0], sizes = [4, 512], strides = [1, 1]} : vector<8x512xf32> to vector<4x512xf32>
    %42 = vector.extract_strided_slice %16 {offsets = [16, 0], sizes = [16, 512], strides = [1, 1]} : vector<32x512xf32> to vector<16x512xf32>
    %cst_22 = arith.constant dense<0xFF800000> : vector<4xf32>
    %43 = vector.multi_reduction <maximumf>, %40, %cst_22 [1] : vector<4x512xf32> to vector<4xf32>
    %44 = vector.shape_cast %43 : vector<4xf32> to vector<4x1xf32>
    %45 = vector.broadcast %44 : vector<4x1xf32> to vector<4x512xf32>
    %46 = arith.subf %40, %45 : vector<4x512xf32>
    %47 = math.exp %46 : vector<4x512xf32>
    %cst_23 = arith.constant dense<0.000000e+00> : vector<4xf32>
    %48 = vector.multi_reduction <add>, %47, %cst_23 [1] : vector<4x512xf32> to vector<4xf32>
    %49 = vector.shape_cast %48 : vector<4xf32> to vector<4x1xf32>
    %50 = vector.broadcast %49 : vector<4x1xf32> to vector<4x512xf32>
    %51 = arith.divf %47, %50 : vector<4x512xf32>
    %cst_24 = arith.constant dense<0xFF800000> : vector<512xf32>
    %52 = vector.multi_reduction <maximumf>, %41, %cst_24 [0] : vector<4x512xf32> to vector<512xf32>
    %53 = vector.shape_cast %52 : vector<512xf32> to vector<1x512xf32>
    %54 = vector.broadcast %53 : vector<1x512xf32> to vector<4x512xf32>
    %55 = arith.subf %41, %54 : vector<4x512xf32>
    %56 = math.exp %55 : vector<4x512xf32>
    %cst_25 = arith.constant dense<0.000000e+00> : vector<512xf32>
    %57 = vector.multi_reduction <add>, %56, %cst_25 [0] : vector<4x512xf32> to vector<512xf32>
    %58 = vector.shape_cast %57 : vector<512xf32> to vector<1x512xf32>
    %59 = vector.broadcast %58 : vector<1x512xf32> to vector<4x512xf32>
    %60 = arith.divf %56, %59 : vector<4x512xf32>
    %cst_26 = arith.constant dense<0.000000e+00> : vector<16x4xf32>
    %61 = tpu.matmul %42, %51, %cst_26 {dimension_numbers = #tpu.dot_dimension_numbers<[1], [1], [0], [0], [0, 0, 1, 0], [], []>} : vector<16x512xf32>, vector<4x512xf32>, vector<16x4xf32> -> vector<16x4xf32>
    %cst_27 = arith.constant dense<0.000000e+00> : vector<16x512xf32>
    %62 = tpu.matmul %61, %60, %cst_27 {dimension_numbers = #tpu.dot_dimension_numbers<[1], [0], [0], [1], [0, 0, 1, 1], [], []>} : vector<16x4xf32>, vector<4x512xf32>, vector<16x512xf32> -> vector<16x512xf32>
    %63 = tpu.concatenate %39, %62 in 0 : vector<16x512xf32>, vector<16x512xf32> -> vector<32x512xf32>
    %c0_28 = arith.constant 0 : index
    %c0_29 = arith.constant 0 : index
    %64 = vector.load %arg8[%c0_28, %c0_29] : memref<16x32xf32, #tpu.memory_space<vmem>>, vector<16x32xf32>
    %cst_30 = arith.constant dense<0.000000e+00> : vector<16x512xf32>
    %65 = tpu.matmul %64, %63, %cst_30 {dimension_numbers = #tpu.dot_dimension_numbers<[1], [0], [0], [1], [0, 0, 1, 1], [], []>} : vector<16x32xf32>, vector<32x512xf32>, vector<16x512xf32> -> vector<16x512xf32>
    %c0_31 = arith.constant 0 : index
    %c0_32 = arith.constant 0 : index
    %66 = vector.load %arg9[%c0_31, %c0_32] : memref<16x1xf32, #tpu.memory_space<vmem>>, vector<16x1xf32>
    %67 = vector.broadcast %66 : vector<16x1xf32> to vector<16x512xf32>
    %68 = arith.addf %65, %67 : vector<16x512xf32>
    %69 = arith.addf %68, %1 : vector<16x512xf32>
    %c0_33 = arith.constant 0 : index
    %c0_34 = arith.constant 0 : index
    %c0_35 = arith.constant 0 : index
    %70 = vector.load %arg10[%c0_33, %c0_34, %c0_35] : memref<1x16x512xf32, #tpu.memory_space<vmem>>, vector<1x16x512xf32>
    %71 = vector.shape_cast %70 : vector<1x16x512xf32> to vector<16x512xf32>
    %72 = vector.shape_cast %69 : vector<16x512xf32> to vector<1x16x512xf32>
    tpu.vector_store %arg10[%c0_33, %c0_34, %c0_35], %72 {strides = array<i32>} : memref<1x16x512xf32, #tpu.memory_space<vmem>>, vector<1x16x512xf32>,
    return
  }
  func.func @transform_0(%arg0: i32) -> (i32, i32, i32) {
    %c0_i32 = arith.constant 0 : i32
    %c0_i32_0 = arith.constant 0 : i32
    %c0_i32_1 = arith.constant 0 : i32
    return %arg0, %c0_i32, %c0_i32_0 : i32, i32, i32
  }
  func.func @transform_1(%arg0: i32) -> (i32, i32) {
    %c0_i32 = arith.constant 0 : i32
    %c0_i32_0 = arith.constant 0 : i32
    %c0_i32_1 = arith.constant 0 : i32
    return %c0_i32, %c0_i32_0 : i32, i32
  }
  func.func @transform_2(%arg0: i32) -> (i32, i32) {
    %c0_i32 = arith.constant 0 : i32
    %c0_i32_0 = arith.constant 0 : i32
    %c0_i32_1 = arith.constant 0 : i32
    return %c0_i32, %c0_i32_0 : i32, i32
  }
  func.func @transform_3(%arg0: i32) -> (i32, i32) {
    %c0_i32 = arith.constant 0 : i32
    %c0_i32_0 = arith.constant 0 : i32
    %c0_i32_1 = arith.constant 0 : i32
    return %c0_i32, %c0_i32_0 : i32, i32
  }
  func.func @transform_4(%arg0: i32) -> (i32, i32) {
    %c0_i32 = arith.constant 0 : i32
    %c0_i32_0 = arith.constant 0 : i32
    %c0_i32_1 = arith.constant 0 : i32
    return %c0_i32, %c0_i32_0 : i32, i32
  }
  func.func @transform_5(%arg0: i32) -> (i32, i32) {
    %c0_i32 = arith.constant 0 : i32
    %c0_i32_0 = arith.constant 0 : i32
    %c0_i32_1 = arith.constant 0 : i32
    return %c0_i32, %c0_i32_0 : i32, i32
  }
  func.func @transform_6(%arg0: i32) -> (i32, i32) {
    %c0_i32 = arith.constant 0 : i32
    %c0_i32_0 = arith.constant 0 : i32
    %c0_i32_1 = arith.constant 0 : i32
    return %c0_i32, %c0_i32_0 : i32, i32
  }
  func.func @transform_7(%arg0: i32) -> (i32, i32) {
    %c0_i32 = arith.constant 0 : i32
    %c0_i32_0 = arith.constant 0 : i32
    %c0_i32_1 = arith.constant 0 : i32
    return %c0_i32, %c0_i32_0 : i32, i32
  }
  func.func @transform_8(%arg0: i32) -> (i32, i32) {
    %c0_i32 = arith.constant 0 : i32
    %c0_i32_0 = arith.constant 0 : i32
    %c0_i32_1 = arith.constant 0 : i32
    return %c0_i32, %c0_i32_0 : i32, i32
  }
  func.func @transform_9(%arg0: i32) -> (i32, i32, i32) {
    %c0_i32 = arith.constant 0 : i32
    %c0_i32_0 = arith.constant 0 : i32
    %c0_i32_1 = arith.constant 0 : i32
    return %arg0, %c0_i32, %c0_i32_0 : i32, i32, i32
  }
}

</mosaic_0001>

<llo_original>
// kernel: tpu_custom_call.1
$region0: #{tpu_custom_call.1}
  #allocation0 [shape = 'u32[]', space=smem, size = 0x4, offset = 0x4, fixed_abs, tag = 'smem constant byte address 0x4 - core index']
  #allocation1 [shape = 'u32[144,128]{1,0:T(1,128)}', space=vmem, size = 0x12000, scoped, tag = 'internal scratch']
  %s0 = inlined_call_operand.hbm [shape: f32[2,16,512], index: 0, kind: input, shape index: {}]
  %s1 = inlined_call_operand.vmem [shape: f32[8,16], index: 1, kind: input, shape index: {}]
  %s2 = inlined_call_operand.vmem [shape: f32[8,1], index: 2, kind: input, shape index: {}]
  %s3 = inlined_call_operand.vmem [shape: f32[8,16], index: 3, kind: input, shape index: {}]
  %s4 = inlined_call_operand.vmem [shape: f32[8,1], index: 4, kind: input, shape index: {}]
  %s5 = inlined_call_operand.vmem [shape: f32[32,16], index: 5, kind: input, shape index: {}]
  %s6 = inlined_call_operand.vmem [shape: f32[32,1], index: 6, kind: input, shape index: {}]
  %s7 = inlined_call_operand.vmem [shape: f32[16,32], index: 7, kind: input, shape index: {}]
  %s8 = inlined_call_operand.vmem [shape: f32[16,1], index: 8, kind: input, shape index: {}]
  %s9 = inlined_call_operand.hbm [shape: f32[2,16,512], index: 9, kind: output, shape index: {}]
  %s10 = sld [smem:[#allocation0]]
  $region73: #{tpu_custom_call.1} parent=0
    _
  %s12 = ssub.s32 1, %s10
  %s13 = scalar_select 0, %s12, %s10
  $region1: #{tpu_custom_call.1} parent=0
    #allocation2 [shape = 'u8[65536]{0}', space=vmem, size = 0x10000, scoped, tag = 'input window, operand 0']
    #allocation3 [shape = 's32[2]{0}', space=sflag, size = 0x8, scoped, tag = 'scoped memory for tpu_custom_call.1']
    #allocation4 [shape = 's32[2]{0}', space=sflag, size = 0x8, scoped, tag = 'scoped memory for tpu_custom_call.1']
    #allocation5 [shape = 'u8[65536]{0}', space=vmem, size = 0x10000, scoped, tag = 'output window, operand 0']
    %14 = vsyncpa [#allocation3], 0
    %s15 = scalar_lea.sflag [#allocation3], 1
    %16 = vsyncpa %s15, 0
    %17 = vsyncpa [#allocation4], 0
    %s18 = scalar_lea.sflag [#allocation4], 1
    %19 = vsyncpa %s18, 0
    loop: start=0, step=1, limit=4
    $region2: #{tpu_custom_call.1} parent=1 // loop_pre_header
      _
    $region3: #{tpu_custom_call.1} parent=1 // loop_header
      %s21 = sphi 0, %s25
      %p22 = scmp.ge.s32.totalorder %s21, 4
      %s31 = sphi 0, %s33
      %s34 = sphi 0, %s31
      %s35 = sphi 0, %s34
      %s51 = sphi 0, %s35
      %s55 = sphi 0, %s55
      %s57 = sphi 0, %s55
      %s58 = sphi 0, %s57
      %s72 = sphi 0, %s58
      %s76 = sphi 0, %s76
      %s78 = sphi 0, %s76
      %s79 = sphi 0, %s78
      %s93 = sphi 0, %s79
      %s97 = sphi 0, %s97
      %s99 = sphi 0, %s97
      %s100 = sphi 0, %s99
      %s114 = sphi 0, %s100
      %s118 = sphi 0, %s118
      %s120 = sphi 0, %s118
      %s121 = sphi 0, %s120
      %s135 = sphi 0, %s121
      %s139 = sphi 0, %s139
      %s141 = sphi 0, %s139
      %s142 = sphi 0, %s141
      %s156 = sphi 0, %s142
      %s160 = sphi 0, %s160
      %s162 = sphi 0, %s160
      %s163 = sphi 0, %s162
      %s177 = sphi 0, %s163
      %s181 = sphi 0, %s181
      %s183 = sphi 0, %s181
      %s184 = sphi 0, %s183
      %s198 = sphi 0, %s184
      %s202 = sphi 0, %s202
      %s204 = sphi 0, %s202
      %s205 = sphi 0, %s204
      %s219 = sphi 0, %s205
      %s225 = sphi 0, %s227
      %s228 = sphi 0, %s225
      %s229 = sphi 0, %s228
      %s245 = sphi 0, %s229
    $region4: #{tpu_custom_call.1} parent=1 // loop_header_branch
      %24 = sbr.rel (%p22) target = $region8
    $region5: #{tpu_custom_call.1} parent=1 // loop_body
      %s26 = ssub.s32 %s21, 1
      %s27 = ssub.s32 %s21, 2
      %s28 = sadd.s32 %s21, 1
      %s29 = ssub.s32 %s21, %s28
      %p30 = scmp.eq.s32.totalorder %s29, 0
      %s32 = sadd.s32 %s31, 1
      %s33 = scalar_select %p30, %s31, %s32
      %p36 = pneg %p30
      %p37 = scmp.eq.s32.totalorder %s21, 1
      %p38 = por %p36, %p37
      %p39 = scmp.ne.s32.totalorder %s31, %s34
      %p40 = scmp.eq.s32.totalorder %s21, 0
      %p41 = por %p39, %p40
      %p42 = scmp.ne.s32.totalorder %s31, %s34
      %p43 = scmp.eq.s32.totalorder %s26, 1
      %p44 = por %p42, %p43
      %p45 = scmp.ne.s32.totalorder %s34, %s35
      %p46 = scmp.eq.s32.totalorder %s26, 0
      %p47 = por %p45, %p46
      %p48 = scmp.ne.s32.totalorder %s34, %s35
      %p49 = scmp.eq.s32.totalorder %s27, 1
      %p50 = por %p48, %p49
      %p52 = scmp.ne.s32.totalorder %s35, %s51
      %p53 = scmp.eq.s32.totalorder %s27, 0
      %p54 = por %p52, %p53
      %s56 = sadd.s32 %s55, 1
      %p59 = scmp.eq.s32.totalorder %s21, 1
      %p60 = scmp.ne.s32.totalorder %s55, %s57
      %p61 = scmp.eq.s32.totalorder %s21, 0
      %p62 = por %p60, %p61
      %p63 = scmp.ne.s32.totalorder %s55, %s57
      %p64 = scmp.eq.s32.totalorder %s26, 1
      %p65 = por %p63, %p64
      %p66 = scmp.ne.s32.totalorder %s57, %s58
      %p67 = scmp.eq.s32.totalorder %s26, 0
      %p68 = por %p66, %p67
      %p69 = scmp.ne.s32.totalorder %s57, %s58
      %p70 = scmp.eq.s32.totalorder %s27, 1
      %p71 = por %p69, %p70
      %p73 = scmp.ne.s32.totalorder %s58, %s72
      %p74 = scmp.eq.s32.totalorder %s27, 0
      %p75 = por %p73, %p74
      %s77 = sadd.s32 %s76, 1
      %p80 = scmp.eq.s32.totalorder %s21, 1
      %p81 = scmp.ne.s32.totalorder %s76, %s78
      %p82 = scmp.eq.s32.totalorder %s21, 0
      %p83 = por %p81, %p82
      %p84 = scmp.ne.s32.totalorder %s76, %s78
      %p85 = scmp.eq.s32.totalorder %s26, 1
      %p86 = por %p84, %p85
      %p87 = scmp.ne.s32.totalorder %s78, %s79
      %p88 = scmp.eq.s32.totalorder %s26, 0
      %p89 = por %p87, %p88
      %p90 = scmp.ne.s32.totalorder %s78, %s79
      %p91 = scmp.eq.s32.totalorder %s27, 1
      %p92 = por %p90, %p91
      %p94 = scmp.ne.s32.totalorder %s79, %s93
      %p95 = scmp.eq.s32.totalorder %s27, 0
      %p96 = por %p94, %p95
      %s98 = sadd.s32 %s97, 1
      %p101 = scmp.eq.s32.totalorder %s21, 1
      %p102 = scmp.ne.s32.totalorder %s97, %s99
      %p103 = scmp.eq.s32.totalorder %s21, 0
      %p104 = por %p102, %p103
      %p105 = scmp.ne.s32.totalorder %s97, %s99
      %p106 = scmp.eq.s32.totalorder %s26, 1
      %p107 = por %p105, %p106
      %p108 = scmp.ne.s32.totalorder %s99, %s100
      %p109 = scmp.eq.s32.totalorder %s26, 0
      %p110 = por %p108, %p109
      %p111 = scmp.ne.s32.totalorder %s99, %s100
      %p112 = scmp.eq.s32.totalorder %s27, 1
      %p113 = por %p111, %p112
      %p115 = scmp.ne.s32.totalorder %s100, %s114
      %p116 = scmp.eq.s32.totalorder %s27, 0
      %p117 = por %p115, %p116
      %s119 = sadd.s32 %s118, 1
      %p122 = scmp.eq.s32.totalorder %s21, 1
      %p123 = scmp.ne.s32.totalorder %s118, %s120
      %p124 = scmp.eq.s32.totalorder %s21, 0
      %p125 = por %p123, %p124
      %p126 = scmp.ne.s32.totalorder %s118, %s120
      %p127 = scmp.eq.s32.totalorder %s26, 1
      %p128 = por %p126, %p127
      %p129 = scmp.ne.s32.totalorder %s120, %s121
      %p130 = scmp.eq.s32.totalorder %s26, 0
      %p131 = por %p129, %p130
      %p132 = scmp.ne.s32.totalorder %s120, %s121
      %p133 = scmp.eq.s32.totalorder %s27, 1
      %p134 = por %p132, %p133
      %p136 = scmp.ne.s32.totalorder %s121, %s135
      %p137 = scmp.eq.s32.totalorder %s27, 0
      %p138 = por %p136, %p137
      %s140 = sadd.s32 %s139, 1
      %p143 = scmp.eq.s32.totalorder %s21, 1
      %p144 = scmp.ne.s32.totalorder %s139, %s141
      %p145 = scmp.eq.s32.totalorder %s21, 0
      %p146 = por %p144, %p145
      %p147 = scmp.ne.s32.totalorder %s139, %s141
      %p148 = scmp.eq.s32.totalorder %s26, 1
      %p149 = por %p147, %p148
      %p150 = scmp.ne.s32.totalorder %s141, %s142
      %p151 = scmp.eq.s32.totalorder %s26, 0
      %p152 = por %p150, %p151
      %p153 = scmp.ne.s32.totalorder %s141, %s142
      %p154 = scmp.eq.s32.totalorder %s27, 1
      %p155 = por %p153, %p154
      %p157 = scmp.ne.s32.totalorder %s142, %s156
      %p158 = scmp.eq.s32.totalorder %s27, 0
      %p159 = por %p157, %p158
      %s161 = sadd.s32 %s160, 1
      %p164 = scmp.eq.s32.totalorder %s21, 1
      %p165 = scmp.ne.s32.totalorder %s160, %s162
      %p166 = scmp.eq.s32.totalorder %s21, 0
      %p167 = por %p165, %p166
      %p168 = scmp.ne.s32.totalorder %s160, %s162
      %p169 = scmp.eq.s32.totalorder %s26, 1
      %p170 = por %p168, %p169
      %p171 = scmp.ne.s32.totalorder %s162, %s163
      %p172 = scmp.eq.s32.totalorder %s26, 0
      %p173 = por %p171, %p172
      %p174 = scmp.ne.s32.totalorder %s162, %s163
      %p175 = scmp.eq.s32.totalorder %s27, 1
      %p176 = por %p174, %p175
      %p178 = scmp.ne.s32.totalorder %s163, %s177
      %p179 = scmp.eq.s32.totalorder %s27, 0
      %p180 = por %p178, %p179
      %s182 = sadd.s32 %s181, 1
      %p185 = scmp.eq.s32.totalorder %s21, 1
      %p186 = scmp.ne.s32.totalorder %s181, %s183
      %p187 = scmp.eq.s32.totalorder %s21, 0
      %p188 = por %p186, %p187
      %p189 = scmp.ne.s32.totalorder %s181, %s183
      %p190 = scmp.eq.s32.totalorder %s26, 1
      %p191 = por %p189, %p190
      %p192 = scmp.ne.s32.totalorder %s183, %s184
      %p193 = scmp.eq.s32.totalorder %s26, 0
      %p194 = por %p192, %p193
      %p195 = scmp.ne.s32.totalorder %s183, %s184
      %p196 = scmp.eq.s32.totalorder %s27, 1
      %p197 = por %p195, %p196
      %p199 = scmp.ne.s32.totalorder %s184, %s198
      %p200 = scmp.eq.s32.totalorder %s27, 0
      %p201 = por %p199, %p200
      %s203 = sadd.s32 %s202, 1
      %p206 = scmp.eq.s32.totalorder %s21, 1
      %p207 = scmp.ne.s32.totalorder %s202, %s204
      %p208 = scmp.eq.s32.totalorder %s21, 0
      %p209 = por %p207, %p208
      %p210 = scmp.ne.s32.totalorder %s202, %s204
      %p211 = scmp.eq.s32.totalorder %s26, 1
      %p212 = por %p210, %p211
      %p213 = scmp.ne.s32.totalorder %s204, %s205
      %p214 = scmp.eq.s32.totalorder %s26, 0
      %p215 = por %p213, %p214
      %p216 = scmp.ne.s32.totalorder %s204, %s205
      %p217 = scmp.eq.s32.totalorder %s27, 1
      %p218 = por %p216, %p217
      %p220 = scmp.ne.s32.totalorder %s205, %s219
      %p221 = scmp.eq.s32.totalorder %s27, 0
      %p222 = por %p220, %p221
      %s223 = ssub.s32 %s21, %s28
      %p224 = scmp.eq.s32.totalorder %s223, 0
      %s226 = sadd.s32 %s225, 1
      %s227 = scalar_select %p224, %s225, %s226
      %p230 = pneg %p224
      %p231 = scmp.eq.s32.totalorder %s21, 1
      %p232 = por %p230, %p231
      %p233 = scmp.ne.s32.totalorder %s225, %s228
      %p234 = scmp.eq.s32.totalorder %s21, 0
      %p235 = por %p233, %p234
      %p236 = scmp.ne.s32.totalorder %s225, %s228
      %p237 = scmp.eq.s32.totalorder %s26, 1
      %p238 = por %p236, %p237
      %p239 = scmp.ne.s32.totalorder %s228, %s229
      %p240 = scmp.eq.s32.totalorder %s26, 0
      %p241 = por %p239, %p240
      %p242 = scmp.ne.s32.totalorder %s228, %s229
      %p243 = scmp.eq.s32.totalorder %s27, 1
      %p244 = por %p242, %p243
      %p246 = scmp.ne.s32.totalorder %s229, %s245
      %p247 = scmp.eq.s32.totalorder %s27, 0
      %p248 = por %p246, %p247
      %p249 = scmp.le.s32.totalorder 1, %s21
      %p250 = scmp.lt.s32.totalorder %s21, 3
      %p251 = pnand %p249, %p250
      %p252 = pneg %p251
      // Predicated region
      $region9: #{tpu_custom_call.1} parent=5 // pred_check
        _
      $region10: #{tpu_custom_call.1} parent=5 // pred_check_branch
        %254 = sbr.rel (%p251) target = $region12
      $region11: #{tpu_custom_call.1} parent=5 // pred_region
        %s255 = ssub.s32 %s21, 1
        // Predicated region
        $region13: #{tpu_custom_call.1} parent=11 // pred_check
          %p256 = pneg %p68
        $region14: #{tpu_custom_call.1} parent=11 // pred_check_branch
          %258 = sbr.rel (%p256) target = $region16
        $region15: #{tpu_custom_call.1} parent=11 // pred_region
          _
        $region16: #{tpu_custom_call.1} parent=11 // pred_fallthru
          _
        // Predicated region
        $region17: #{tpu_custom_call.1} parent=11 // pred_check
          %p259 = pneg %p89
        $region18: #{tpu_custom_call.1} parent=11 // pred_check_branch
          %261 = sbr.rel (%p259) target = $region20
        $region19: #{tpu_custom_call.1} parent=11 // pred_region
          _
        $region20: #{tpu_custom_call.1} parent=11 // pred_fallthru
          _
        // Predicated region
        $region21: #{tpu_custom_call.1} parent=11 // pred_check
          %p262 = pneg %p110
        $region22: #{tpu_custom_call.1} parent=11 // pred_check_branch
          %264 = sbr.rel (%p262) target = $region24
        $region23: #{tpu_custom_call.1} parent=11 // pred_region
          _
        $region24: #{tpu_custom_call.1} parent=11 // pred_fallthru
          _
        // Predicated region
        $region25: #{tpu_custom_call.1} parent=11 // pred_check
          %p265 = pneg %p131
        $region26: #{tpu_custom_call.1} parent=11 // pred_check_branch
          %267 = sbr.rel (%p265) target = $region28
        $region27: #{tpu_custom_call.1} parent=11 // pred_region
          _
        $region28: #{tpu_custom_call.1} parent=11 // pred_fallthru
          _
        // Predicated region
        $region29: #{tpu_custom_call.1} parent=11 // pred_check
          %p268 = pneg %p152
        $region30: #{tpu_custom_call.1} parent=11 // pred_check_branch
          %270 = sbr.rel (%p268) target = $region32
        $region31: #{tpu_custom_call.1} parent=11 // pred_region
          _
        $region32: #{tpu_custom_call.1} parent=11 // pred_fallthru
          _
        // Predicated region
        $region33: #{tpu_custom_call.1} parent=11 // pred_check
          %p271 = pneg %p173
        $region34: #{tpu_custom_call.1} parent=11 // pred_check_branch
          %273 = sbr.rel (%p271) target = $region36
        $region35: #{tpu_custom_call.1} parent=11 // pred_region
          _
        $region36: #{tpu_custom_call.1} parent=11 // pred_fallthru
          _
        // Predicated region
        $region37: #{tpu_custom_call.1} parent=11 // pred_check
          %p274 = pneg %p194
        $region38: #{tpu_custom_call.1} parent=11 // pred_check_branch
          %276 = sbr.rel (%p274) target = $region40
        $region39: #{tpu_custom_call.1} parent=11 // pred_region
          _
        $region40: #{tpu_custom_call.1} parent=11 // pred_fallthru
          _
        // Predicated region
        $region41: #{tpu_custom_call.1} parent=11 // pred_check
          %p277 = pneg %p215
        $region42: #{tpu_custom_call.1} parent=11 // pred_check_branch
          %279 = sbr.rel (%p277) target = $region44
        $region43: #{tpu_custom_call.1} parent=11 // pred_region
          _
        $region44: #{tpu_custom_call.1} parent=11 // pred_fallthru
          _
      $region12: #{tpu_custom_call.1} parent=5 // pred_fallthru
        _
      %p280 = scmp.lt.s32.totalorder %s21, 2
      // Predicated region
      $region45: #{tpu_custom_call.1} parent=5 // pred_check
        %p281 = pneg %p280
      $region46: #{tpu_custom_call.1} parent=5 // pred_check_branch
        %283 = sbr.rel (%p281) target = $region48
      $region47: #{tpu_custom_call.1} parent=5 // pred_region
        // Predicated region
        $region49: #{tpu_custom_call.1} parent=47 // pred_check
          %p284 = pneg %p41
        $region50: #{tpu_custom_call.1} parent=47 // pred_check_branch
          %286 = sbr.rel (%p284) target = $region52
        $region51: #{tpu_custom_call.1} parent=47 // pred_region
          %s287 = sand.u32 %s31, 1
          %s288 = scalar_lea.sflag [#allocation3], %s287
          %s289 = sand.u32 %s31, 1
          %s290 = smul.addr %s289, 64
          %s291 = scalar_lea.vmem [#allocation2], %s290
          %s293 = ssub.s32 1024, 1024
          %294 = vsyncadd %s288, %s293
          %s295 = smul.addr %s21, 8
          %s296 = smul.addr %s295, 128
          %s297 = scalar_lea.hbm %s0, %s296
          %s298 = sshll.u32 %s291, 4
          %s299 = int_to_ptr.vmem [resolvable:$true] %s298
          %304 = dma.hbm_to_vmem [thread:$0]  %s297, 1024, %s299, %s288, 512, 512, 32
        $region52: #{tpu_custom_call.1} parent=47 // pred_fallthru
          _
      $region48: #{tpu_custom_call.1} parent=5 // pred_fallthru
        _
      %p305 = scmp.le.s32.totalorder 1, %s21
      %p306 = scmp.lt.s32.totalorder %s21, 3
      %p307 = pnand %p305, %p306
      %p308 = pneg %p307
      // Predicated region
      $region53: #{tpu_custom_call.1} parent=5 // pred_check
        _
      $region54: #{tpu_custom_call.1} parent=5 // pred_check_branch
        %310 = sbr.rel (%p307) target = $region56
      $region55: #{tpu_custom_call.1} parent=5 // pred_region
        %s311 = ssub.s32 %s21, 1
        %s312 = sand.u32 %s34, 1
        %s313 = scalar_lea.sflag [#allocation3], %s312
        %s314 = sand.u32 %s34, 1
        %s315 = smul.addr %s314, 64
        %s316 = scalar_lea.vmem [#allocation2], %s315
        // Predicated region
        $region57: #{tpu_custom_call.1} parent=55 // pred_check
          %p317 = pneg %p47
        $region58: #{tpu_custom_call.1} parent=55 // pred_check_branch
          %319 = sbr.rel (%p317) target = $region60
        $region59: #{tpu_custom_call.1} parent=55 // pred_region
          %320 = dma.done %s313, 1024
        $region60: #{tpu_custom_call.1} parent=55 // pred_fallthru
          _
        %s321 = sand.u32 %s34, 1
        %s322 = scalar_lea.sflag [#allocation3], %s321
        %s323 = sand.u32 %s34, 1
        %s324 = smul.addr %s323, 64
        %s325 = scalar_lea.vmem [#allocation2], %s324
        %p326 = pneg %p47
        %p327 = pneg %p44
        %p328 = pneg %p68
        %p329 = pneg %p65
        %p330 = pneg %p89
        %p331 = pneg %p86
        %p332 = pneg %p110
        %p333 = pneg %p107
        %p334 = pneg %p131
        %p335 = pneg %p128
        %p336 = pneg %p152
        %p337 = pneg %p149
        %p338 = pneg %p173
        %p339 = pneg %p170
        %p340 = pneg %p194
        %p341 = pneg %p191
        %p342 = pneg %p215
        %p343 = pneg %p212
        %p344 = pneg %p241
        %p345 = pneg %p238
        %s346 = sand.u32 %s228, 1
        %s347 = scalar_lea.sflag [#allocation4], %s346
        %s348 = sand.u32 %s228, 1
        %s349 = smul.addr %s348, 64
        %s350 = scalar_lea.vmem [#allocation5], %s349
        %v351 = vld [vmem:[%s316] sm:$0xff]
        %v352 = vld [vmem:[%s316 + $0x8] sm:$0xff]
        %v353 = vld [vmem:[%s316 + $0x10] sm:$0xff]
        %v354 = vld [vmem:[%s316 + $0x18] sm:$0xff]
        %v355 = vld [vmem:[%s316 + $0x20] sm:$0xff]
        %v356 = vld [vmem:[%s316 + $0x28] sm:$0xff]
        %v357 = vld [vmem:[%s316 + $0x30] sm:$0xff]
        %v358 = vld [vmem:[%s316 + $0x38] sm:$0xff]
        %v359 = vld [vmem:[%s1] sm:$0xff]
        %v360 = vld [vmem:[%s2] sm:$0xff]
        %362 = vset.pattern.permute.xlu0 0
        %363 = vperm.xlu0 %362, %v360
        %v364 = vpop.permute.xlu0 %363
        %vm366 = vcmask 130048
        %v368 = vsel %vm366, %v359, 0
        %370 = vmatprep.subr.mxu0 0.0
        %371 = vmatpush1.msra.mxu0 0.0
        %372 = vmatprep.subr.mxu0 0.0
        %373 = vmatpush1.msra.mxu0 0.0
        %374 = vmatprep.subr.mxu0 0.0
        %375 = vmatpush1.msra.mxu0 0.0
        %376 = vmatprep.subr.mxu0 0.0
        %377 = vmatpush1.msra.mxu0 0.0
        %378 = vmatprep.subr.mxu0 0.0
        %379 = vmatpush1.msra.mxu0 0.0
        %380 = vmatprep.subr.mxu0 0.0
        %381 = vmatpush1.msra.mxu0 0.0
        %382 = vmatprep.subr.mxu0 0.0
        %383 = vmatpush1.msra.mxu0 0.0
        %384 = vmatprep.subr.mxu0 0.0
        %385 = vmatpush1.msra.mxu0 0.0
        %386 = vmatprep.subr.mxu0 0.0
        %387 = vmatpush1.msra.mxu0 0.0
        %388 = vmatprep.subr.mxu0 0.0
        %389 = vmatpush1.msra.mxu0 0.0
        %390 = vmatprep.subr.mxu0 0.0
        %391 = vmatpush1.msra.mxu0 0.0
        %392 = vmatprep.subr.mxu0 0.0
        %393 = vmatpush1.msra.mxu0 0.0
        %394 = vmatprep.subr.mxu0 0.0
        %395 = vmatpush1.msra.mxu0 0.0
        %396 = vmatprep.subr.mxu0 0.0
        %397 = vmatpush1.msra.mxu0 0.0
        %398 = vmatprep.subr.mxu0 %v356
        %399 = vmatpush1.msra.mxu0 %v355
        %400 = vmatprep.subr.mxu0 %v352
        %401 = vmatpush1.msra.mxu0 %v351
        %402 = vmatprep.subr.mxu0 0.0
        %403 = vmatpush2.msra.mxu0 0.0
        %404 = vmatprep.subr.mxu0 0.0
        %405 = vmatpush2.msra.mxu0 0.0
        %406 = vmatprep.subr.mxu0 0.0
        %407 = vmatpush2.msra.mxu0 0.0
        %408 = vmatprep.subr.mxu0 0.0
        %409 = vmatpush2.msra.mxu0 0.0
        %410 = vmatprep.subr.mxu0 0.0
        %411 = vmatpush2.msra.mxu0 0.0
        %412 = vmatprep.subr.mxu0 0.0
        %413 = vmatpush2.msra.mxu0 0.0
        %414 = vmatprep.subr.mxu0 0.0
        %415 = vmatpush2.msra.mxu0 0.0
        %416 = vmatprep.subr.mxu0 0.0
        %417 = vmatpush2.msra.mxu0 0.0
        %418 = vmatprep.subr.mxu0 0.0
        %419 = vmatpush2.msra.mxu0 0.0
        %420 = vmatprep.subr.mxu0 0.0
        %421 = vmatpush2.msra.mxu0 0.0
        %422 = vmatprep.subr.mxu0 0.0
        %423 = vmatpush2.msra.mxu0 0.0
        %424 = vmatprep.subr.mxu0 0.0
        %425 = vmatpush2.msra.mxu0 0.0
        %426 = vmatprep.subr.mxu0 0.0
        %427 = vmatpush2.msra.mxu0 0.0
        %428 = vmatprep.subr.mxu0 0.0
        %429 = vmatpush2.msra.mxu0 0.0
        %430 = vmatprep.subr.mxu0 0.0
        %431 = vmatpush2.msra.mxu0 0.0
        %432 = vmatprep.subr.mxu0 0.0
        %433 = vmatpush2.msra.mxu0 0.0
        %434 = vmatprep.mubr.f32.mxu0 0.0
        %435 = vmatmul.mubr.f32.gmra.mxu0 %v368
        %v436 = vpop.f32.mrf.mxu0
        %v437 = vadd.f32 %v364, %v436
        %v438 = vpop.f32.mrf.mxu0
        %v439 = vadd.f32 %v364, %v438
        %440 = vdwg.mxu0
        %441 = vmatprep.subr.mxu0 0.0
        %442 = vmatpush1.msra.mxu0 0.0
        %443 = vmatprep.subr.mxu0 0.0
        %444 = vmatpush1.msra.mxu0 0.0
        %445 = vmatprep.subr.mxu0 0.0
        %446 = vmatpush1.msra.mxu0 0.0
        %447 = vmatprep.subr.mxu0 0.0
        %448 = vmatpush1.msra.mxu0 0.0
        %449 = vmatprep.subr.mxu0 0.0
        %450 = vmatpush1.msra.mxu0 0.0
        %451 = vmatprep.subr.mxu0 0.0
        %452 = vmatpush1.msra.mxu0 0.0
        %453 = vmatprep.subr.mxu0 0.0
        %454 = vmatpush1.msra.mxu0 0.0
        %455 = vmatprep.subr.mxu0 0.0
        %456 = vmatpush1.msra.mxu0 0.0
        %457 = vmatprep.subr.mxu0 0.0
        %458 = vmatpush1.msra.mxu0 0.0
        %459 = vmatprep.subr.mxu0 0.0
        %460 = vmatpush1.msra.mxu0 0.0
        %461 = vmatprep.subr.mxu0 0.0
        %462 = vmatpush1.msra.mxu0 0.0
        %463 = vmatprep.subr.mxu0 0.0
        %464 = vmatpush1.msra.mxu0 0.0
        %465 = vmatprep.subr.mxu0 0.0
        %466 = vmatpush1.msra.mxu0 0.0
        %467 = vmatprep.subr.mxu0 0.0
        %468 = vmatpush1.msra.mxu0 0.0
        %469 = vmatprep.subr.mxu0 %v358
        %470 = vmatpush1.msra.mxu0 %v357
        %471 = vmatprep.subr.mxu0 %v354
        %472 = vmatpush1.msra.mxu0 %v353
        %473 = vmatprep.subr.mxu0 0.0
        %474 = vmatpush2.msra.mxu0 0.0
        %475 = vmatprep.subr.mxu0 0.0
        %476 = vmatpush2.msra.mxu0 0.0
        %477 = vmatprep.subr.mxu0 0.0
        %478 = vmatpush2.msra.mxu0 0.0
        %479 = vmatprep.subr.mxu0 0.0
        %480 = vmatpush2.msra.mxu0 0.0
        %481 = vmatprep.subr.mxu0 0.0
        %482 = vmatpush2.msra.mxu0 0.0
        %483 = vmatprep.subr.mxu0 0.0
        %484 = vmatpush2.msra.mxu0 0.0
        %485 = vmatprep.subr.mxu0 0.0
        %486 = vmatpush2.msra.mxu0 0.0
        %487 = vmatprep.subr.mxu0 0.0
        %488 = vmatpush2.msra.mxu0 0.0
        %489 = vmatprep.subr.mxu0 0.0
        %490 = vmatpush2.msra.mxu0 0.0
        %491 = vmatprep.subr.mxu0 0.0
        %492 = vmatpush2.msra.mxu0 0.0
        %493 = vmatprep.subr.mxu0 0.0
        %494 = vmatpush2.msra.mxu0 0.0
        %495 = vmatprep.subr.mxu0 0.0
        %496 = vmatpush2.msra.mxu0 0.0
        %497 = vmatprep.subr.mxu0 0.0
        %498 = vmatpush2.msra.mxu0 0.0
        %499 = vmatprep.subr.mxu0 0.0
        %500 = vmatpush2.msra.mxu0 0.0
        %501 = vmatprep.subr.mxu0 0.0
        %502 = vmatpush2.msra.mxu0 0.0
        %503 = vmatprep.subr.mxu0 0.0
        %504 = vmatpush2.msra.mxu0 0.0
        %505 = vmatprep.mubr.f32.mxu0 0.0
        %506 = vmatmul.mubr.f32.gmra.mxu0 %v368
        %v507 = vpop.f32.mrf.mxu0
        %v508 = vadd.f32 %v364, %v507
        %v509 = vpop.f32.mrf.mxu0
        %v510 = vadd.f32 %v364, %v509
        %511 = vdwg.mxu0
        %v512 = vld [vmem:[%s3] sm:$0xff]
        %v513 = vld [vmem:[%s4] sm:$0xff]
        %515 = vset.pattern.permute.xlu0 0
        %516 = vperm.xlu0 %515, %v513
        %v517 = vpop.permute.xlu0 %516
        %v520 = vsel %vm366, %v512, 0
        %522 = vmatprep.subr.mxu0 0.0
        %523 = vmatpush1.msra.mxu0 0.0
        %524 = vmatprep.subr.mxu0 0.0
        %525 = vmatpush1.msra.mxu0 0.0
        %526 = vmatprep.subr.mxu0 0.0
        %527 = vmatpush1.msra.mxu0 0.0
        %528 = vmatprep.subr.mxu0 0.0
        %529 = vmatpush1.msra.mxu0 0.0
        %530 = vmatprep.subr.mxu0 0.0
        %531 = vmatpush1.msra.mxu0 0.0
        %532 = vmatprep.subr.mxu0 0.0
        %533 = vmatpush1.msra.mxu0 0.0
        %534 = vmatprep.subr.mxu0 0.0
        %535 = vmatpush1.msra.mxu0 0.0
        %536 = vmatprep.subr.mxu0 0.0
        %537 = vmatpush1.msra.mxu0 0.0
        %538 = vmatprep.subr.mxu0 0.0
        %539 = vmatpush1.msra.mxu0 0.0
        %540 = vmatprep.subr.mxu0 0.0
        %541 = vmatpush1.msra.mxu0 0.0
        %542 = vmatprep.subr.mxu0 0.0
        %543 = vmatpush1.msra.mxu0 0.0
        %544 = vmatprep.subr.mxu0 0.0
        %545 = vmatpush1.msra.mxu0 0.0
        %546 = vmatprep.subr.mxu0 0.0
        %547 = vmatpush1.msra.mxu0 0.0
        %548 = vmatprep.subr.mxu0 0.0
        %549 = vmatpush1.msra.mxu0 0.0
        %550 = vmatprep.subr.mxu0 %v356
        %551 = vmatpush1.msra.mxu0 %v355
        %552 = vmatprep.subr.mxu0 %v352
        %553 = vmatpush1.msra.mxu0 %v351
        %554 = vmatprep.subr.mxu0 0.0
        %555 = vmatpush2.msra.mxu0 0.0
        %556 = vmatprep.subr.mxu0 0.0
        %557 = vmatpush2.msra.mxu0 0.0
        %558 = vmatprep.subr.mxu0 0.0
        %559 = vmatpush2.msra.mxu0 0.0
        %560 = vmatprep.subr.mxu0 0.0
        %561 = vmatpush2.msra.mxu0 0.0
        %562 = vmatprep.subr.mxu0 0.0
        %563 = vmatpush2.msra.mxu0 0.0
        %564 = vmatprep.subr.mxu0 0.0
        %565 = vmatpush2.msra.mxu0 0.0
        %566 = vmatprep.subr.mxu0 0.0
        %567 = vmatpush2.msra.mxu0 0.0
        %568 = vmatprep.subr.mxu0 0.0
        %569 = vmatpush2.msra.mxu0 0.0
        %570 = vmatprep.subr.mxu0 0.0
        %571 = vmatpush2.msra.mxu0 0.0
        %572 = vmatprep.subr.mxu0 0.0
        %573 = vmatpush2.msra.mxu0 0.0
        %574 = vmatprep.subr.mxu0 0.0
        %575 = vmatpush2.msra.mxu0 0.0
        %576 = vmatprep.subr.mxu0 0.0
        %577 = vmatpush2.msra.mxu0 0.0
        %578 = vmatprep.subr.mxu0 0.0
        %579 = vmatpush2.msra.mxu0 0.0
        %580 = vmatprep.subr.mxu0 0.0
        %581 = vmatpush2.msra.mxu0 0.0
        %582 = vmatprep.subr.mxu0 0.0
        %583 = vmatpush2.msra.mxu0 0.0
        %584 = vmatprep.subr.mxu0 0.0
        %585 = vmatpush2.msra.mxu0 0.0
        %586 = vmatprep.mubr.f32.mxu0 0.0
        %587 = vmatmul.mubr.f32.gmra.mxu0 %v520
        %v588 = vpop.f32.mrf.mxu0
        %v589 = vadd.f32 %v517, %v588
        %v590 = vpop.f32.mrf.mxu0
        %v591 = vadd.f32 %v517, %v590
        %592 = vdwg.mxu0
        %593 = vmatprep.subr.mxu0 0.0
        %594 = vmatpush1.msra.mxu0 0.0
        %595 = vmatprep.subr.mxu0 0.0
        %596 = vmatpush1.msra.mxu0 0.0
        %597 = vmatprep.subr.mxu0 0.0
        %598 = vmatpush1.msra.mxu0 0.0
        %599 = vmatprep.subr.mxu0 0.0
        %600 = vmatpush1.msra.mxu0 0.0
        %601 = vmatprep.subr.mxu0 0.0
        %602 = vmatpush1.msra.mxu0 0.0
        %603 = vmatprep.subr.mxu0 0.0
        %604 = vmatpush1.msra.mxu0 0.0
        %605 = vmatprep.subr.mxu0 0.0
        %606 = vmatpush1.msra.mxu0 0.0
        %607 = vmatprep.subr.mxu0 0.0
        %608 = vmatpush1.msra.mxu0 0.0
        %609 = vmatprep.subr.mxu0 0.0
        %610 = vmatpush1.msra.mxu0 0.0
        %611 = vmatprep.subr.mxu0 0.0
        %612 = vmatpush1.msra.mxu0 0.0
        %613 = vmatprep.subr.mxu0 0.0
        %614 = vmatpush1.msra.mxu0 0.0
        %615 = vmatprep.subr.mxu0 0.0
        %616 = vmatpush1.msra.mxu0 0.0
        %617 = vmatprep.subr.mxu0 0.0
        %618 = vmatpush1.msra.mxu0 0.0
        %619 = vmatprep.subr.mxu0 0.0
        %620 = vmatpush1.msra.mxu0 0.0
        %621 = vmatprep.subr.mxu0 %v358
        %622 = vmatpush1.msra.mxu0 %v357
        %623 = vmatprep.subr.mxu0 %v354
        %624 = vmatpush1.msra.mxu0 %v353
        %625 = vmatprep.subr.mxu0 0.0
        %626 = vmatpush2.msra.mxu0 0.0
        %627 = vmatprep.subr.mxu0 0.0
        %628 = vmatpush2.msra.mxu0 0.0
        %629 = vmatprep.subr.mxu0 0.0
        %630 = vmatpush2.msra.mxu0 0.0
        %631 = vmatprep.subr.mxu0 0.0
        %632 = vmatpush2.msra.mxu0 0.0
        %633 = vmatprep.subr.mxu0 0.0
        %634 = vmatpush2.msra.mxu0 0.0
        %635 = vmatprep.subr.mxu0 0.0
        %636 = vmatpush2.msra.mxu0 0.0
        %637 = vmatprep.subr.mxu0 0.0
        %638 = vmatpush2.msra.mxu0 0.0
        %639 = vmatprep.subr.mxu0 0.0
        %640 = vmatpush2.msra.mxu0 0.0
        %641 = vmatprep.subr.mxu0 0.0
        %642 = vmatpush2.msra.mxu0 0.0
        %643 = vmatprep.subr.mxu0 0.0
        %644 = vmatpush2.msra.mxu0 0.0
        %645 = vmatprep.subr.mxu0 0.0
        %646 = vmatpush2.msra.mxu0 0.0
        %647 = vmatprep.subr.mxu0 0.0
        %648 = vmatpush2.msra.mxu0 0.0
        %649 = vmatprep.subr.mxu0 0.0
        %650 = vmatpush2.msra.mxu0 0.0
        %651 = vmatprep.subr.mxu0 0.0
        %652 = vmatpush2.msra.mxu0 0.0
        %653 = vmatprep.subr.mxu0 0.0
        %654 = vmatpush2.msra.mxu0 0.0
        %655 = vmatprep.subr.mxu0 0.0
        %656 = vmatpush2.msra.mxu0 0.0
        %657 = vmatprep.mubr.f32.mxu0 0.0
        %658 = vmatmul.mubr.f32.gmra.mxu0 %v520
        %v659 = vpop.f32.mrf.mxu0
        %v660 = vadd.f32 %v517, %v659
        %v661 = vpop.f32.mrf.mxu0
        %v662 = vadd.f32 %v517, %v661
        %663 = vdwg.mxu0
        %v664 = vld [vmem:[%s5] sm:$0xff]
        %v665 = vld [vmem:[%s5 + $0x8] sm:$0xff]
        %v666 = vld [vmem:[%s5 + $0x10] sm:$0xff]
        %v667 = vld [vmem:[%s5 + $0x18] sm:$0xff]
        %v668 = vld [vmem:[%s6] sm:$0xff]
        %v669 = vld [vmem:[%s6 + $0x8] sm:$0xff]
        %v670 = vld [vmem:[%s6 + $0x10] sm:$0xff]
        %v671 = vld [vmem:[%s6 + $0x18] sm:$0xff]
        %673 = vset.pattern.permute.xlu0 0
        %674 = vperm.xlu0 %673, %v668
        %v675 = vpop.permute.xlu0 %674
        %678 = vset.pattern.permute.xlu0 0
        %679 = vperm.xlu0 %678, %v669
        %v680 = vpop.permute.xlu0 %679
        %683 = vset.pattern.permute.xlu0 0
        %684 = vperm.xlu0 %683, %v670
        %v685 = vpop.permute.xlu0 %684
        %688 = vset.pattern.permute.xlu0 0
        %689 = vperm.xlu0 %688, %v671
        %v690 = vpop.permute.xlu0 %689
        %v693 = vsel %vm366, %v664, 0
        %v696 = vsel %vm366, %v665, 0
        %v699 = vsel %vm366, %v666, 0
        %v702 = vsel %vm366, %v667, 0
        %704 = vmatprep.subr.mxu0 0.0
        %705 = vmatpush1.msra.mxu0 0.0
        %706 = vmatprep.subr.mxu0 0.0
        %707 = vmatpush1.msra.mxu0 0.0
        %708 = vmatprep.subr.mxu0 0.0
        %709 = vmatpush1.msra.mxu0 0.0
        %710 = vmatprep.subr.mxu0 0.0
        %711 = vmatpush1.msra.mxu0 0.0
        %712 = vmatprep.subr.mxu0 0.0
        %713 = vmatpush1.msra.mxu0 0.0
        %714 = vmatprep.subr.mxu0 0.0
        %715 = vmatpush1.msra.mxu0 0.0
        %716 = vmatprep.subr.mxu0 0.0
        %717 = vmatpush1.msra.mxu0 0.0
        %718 = vmatprep.subr.mxu0 0.0
        %719 = vmatpush1.msra.mxu0 0.0
        %720 = vmatprep.subr.mxu0 0.0
        %721 = vmatpush1.msra.mxu0 0.0
        %722 = vmatprep.subr.mxu0 0.0
        %723 = vmatpush1.msra.mxu0 0.0
        %724 = vmatprep.subr.mxu0 0.0
        %725 = vmatpush1.msra.mxu0 0.0
        %726 = vmatprep.subr.mxu0 0.0
        %727 = vmatpush1.msra.mxu0 0.0
        %728 = vmatprep.subr.mxu0 0.0
        %729 = vmatpush1.msra.mxu0 0.0
        %730 = vmatprep.subr.mxu0 0.0
        %731 = vmatpush1.msra.mxu0 0.0
        %732 = vmatprep.subr.mxu0 %v356
        %733 = vmatpush1.msra.mxu0 %v355
        %734 = vmatprep.subr.mxu0 %v352
        %735 = vmatpush1.msra.mxu0 %v351
        %736 = vmatprep.subr.mxu0 0.0
        %737 = vmatpush2.msra.mxu0 0.0
        %738 = vmatprep.subr.mxu0 0.0
        %739 = vmatpush2.msra.mxu0 0.0
        %740 = vmatprep.subr.mxu0 0.0
        %741 = vmatpush2.msra.mxu0 0.0
        %742 = vmatprep.subr.mxu0 0.0
        %743 = vmatpush2.msra.mxu0 0.0
        %744 = vmatprep.subr.mxu0 0.0
        %745 = vmatpush2.msra.mxu0 0.0
        %746 = vmatprep.subr.mxu0 0.0
        %747 = vmatpush2.msra.mxu0 0.0
        %748 = vmatprep.subr.mxu0 0.0
        %749 = vmatpush2.msra.mxu0 0.0
        %750 = vmatprep.subr.mxu0 0.0
        %751 = vmatpush2.msra.mxu0 0.0
        %752 = vmatprep.subr.mxu0 0.0
        %753 = vmatpush2.msra.mxu0 0.0
        %754 = vmatprep.subr.mxu0 0.0
        %755 = vmatpush2.msra.mxu0 0.0
        %756 = vmatprep.subr.mxu0 0.0
        %757 = vmatpush2.msra.mxu0 0.0
        %758 = vmatprep.subr.mxu0 0.0
        %759 = vmatpush2.msra.mxu0 0.0
        %760 = vmatprep.subr.mxu0 0.0
        %761 = vmatpush2.msra.mxu0 0.0
        %762 = vmatprep.subr.mxu0 0.0
        %763 = vmatpush2.msra.mxu0 0.0
        %764 = vmatprep.subr.mxu0 0.0
        %765 = vmatpush2.msra.mxu0 0.0
        %766 = vmatprep.subr.mxu0 0.0
        %767 = vmatpush2.msra.mxu0 0.0
        %768 = vmatprep.mubr.f32.mxu0 0.0
        %769 = vmatmul.mubr.f32.gmra.mxu0 %v693
        %v770 = vpop.f32.mrf.mxu0
        %v771 = vadd.f32 %v675, %v770
        %v772 = vpop.f32.mrf.mxu0
        %v773 = vadd.f32 %v675, %v772
        %774 = vmatprep.mubr.f32.mxu0 0.0
        %775 = vmatmul.mubr.f32.gmra.mxu0 %v696
        %v776 = vpop.f32.mrf.mxu0
        %v777 = vadd.f32 %v680, %v776
        %v778 = vpop.f32.mrf.mxu0
        %v779 = vadd.f32 %v680, %v778
        %780 = vmatprep.mubr.f32.mxu0 0.0
        %781 = vmatmul.mubr.f32.gmra.mxu0 %v699
        %v782 = vpop.f32.mrf.mxu0
        %v783 = vadd.f32 %v685, %v782
        %v784 = vpop.f32.mrf.mxu0
        %v785 = vadd.f32 %v685, %v784
        %786 = vmatprep.mubr.f32.mxu0 0.0
        %787 = vmatmul.mubr.f32.gmra.mxu0 %v702
        %v788 = vpop.f32.mrf.mxu0
        %v789 = vadd.f32 %v690, %v788
        %v790 = vpop.f32.mrf.mxu0
        %v791 = vadd.f32 %v690, %v790
        %792 = vdwg.mxu0
        %793 = vmatprep.subr.mxu0 0.0
        %794 = vmatpush1.msra.mxu0 0.0
        %795 = vmatprep.subr.mxu0 0.0
        %796 = vmatpush1.msra.mxu0 0.0
        %797 = vmatprep.subr.mxu0 0.0
        %798 = vmatpush1.msra.mxu0 0.0
        %799 = vmatprep.subr.mxu0 0.0
        %800 = vmatpush1.msra.mxu0 0.0
        %801 = vmatprep.subr.mxu0 0.0
        %802 = vmatpush1.msra.mxu0 0.0
        %803 = vmatprep.subr.mxu0 0.0
        %804 = vmatpush1.msra.mxu0 0.0
        %805 = vmatprep.subr.mxu0 0.0
        %806 = vmatpush1.msra.mxu0 0.0
        %807 = vmatprep.subr.mxu0 0.0
        %808 = vmatpush1.msra.mxu0 0.0
        %809 = vmatprep.subr.mxu0 0.0
        %810 = vmatpush1.msra.mxu0 0.0
        %811 = vmatprep.subr.mxu0 0.0
        %812 = vmatpush1.msra.mxu0 0.0
        %813 = vmatprep.subr.mxu0 0.0
        %814 = vmatpush1.msra.mxu0 0.0
        %815 = vmatprep.subr.mxu0 0.0
        %816 = vmatpush1.msra.mxu0 0.0
        %817 = vmatprep.subr.mxu0 0.0
        %818 = vmatpush1.msra.mxu0 0.0
        %819 = vmatprep.subr.mxu0 0.0
        %820 = vmatpush1.msra.mxu0 0.0
        %821 = vmatprep.subr.mxu0 %v358
        %822 = vmatpush1.msra.mxu0 %v357
        %823 = vmatprep.subr.mxu0 %v354
        %824 = vmatpush1.msra.mxu0 %v353
        %825 = vmatprep.subr.mxu0 0.0
        %826 = vmatpush2.msra.mxu0 0.0
        %827 = vmatprep.subr.mxu0 0.0
        %828 = vmatpush2.msra.mxu0 0.0
        %829 = vmatprep.subr.mxu0 0.0
        %830 = vmatpush2.msra.mxu0 0.0
        %831 = vmatprep.subr.mxu0 0.0
        %832 = vmatpush2.msra.mxu0 0.0
        %833 = vmatprep.subr.mxu0 0.0
        %834 = vmatpush2.msra.mxu0 0.0
        %835 = vmatprep.subr.mxu0 0.0
        %836 = vmatpush2.msra.mxu0 0.0
        %837 = vmatprep.subr.mxu0 0.0
        %838 = vmatpush2.msra.mxu0 0.0
        %839 = vmatprep.subr.mxu0 0.0
        %840 = vmatpush2.msra.mxu0 0.0
        %841 = vmatprep.subr.mxu0 0.0
        %842 = vmatpush2.msra.mxu0 0.0
        %843 = vmatprep.subr.mxu0 0.0
        %844 = vmatpush2.msra.mxu0 0.0
        %845 = vmatprep.subr.mxu0 0.0
        %846 = vmatpush2.msra.mxu0 0.0
        %847 = vmatprep.subr.mxu0 0.0
        %848 = vmatpush2.msra.mxu0 0.0
        %849 = vmatprep.subr.mxu0 0.0
        %850 = vmatpush2.msra.mxu0 0.0
        %851 = vmatprep.subr.mxu0 0.0
        %852 = vmatpush2.msra.mxu0 0.0
        %853 = vmatprep.subr.mxu0 0.0
        %854 = vmatpush2.msra.mxu0 0.0
        %855 = vmatprep.subr.mxu0 0.0
        %856 = vmatpush2.msra.mxu0 0.0
        %857 = vmatprep.mubr.f32.mxu0 0.0
        %858 = vmatmul.mubr.f32.gmra.mxu0 %v693
        %v859 = vpop.f32.mrf.mxu0
        %v860 = vadd.f32 %v675, %v859
        %v861 = vpop.f32.mrf.mxu0
        %v862 = vadd.f32 %v675, %v861
        %863 = vmatprep.mubr.f32.mxu0 0.0
        %864 = vmatmul.mubr.f32.gmra.mxu0 %v696
        %v865 = vpop.f32.mrf.mxu0
        %v866 = vadd.f32 %v680, %v865
        %v867 = vpop.f32.mrf.mxu0
        %v868 = vadd.f32 %v680, %v867
        %869 = vmatprep.mubr.f32.mxu0 0.0
        %870 = vmatmul.mubr.f32.gmra.mxu0 %v699
        %v871 = vpop.f32.mrf.mxu0
        %v872 = vadd.f32 %v685, %v871
        %v873 = vpop.f32.mrf.mxu0
        %v874 = vadd.f32 %v685, %v873
        %875 = vmatprep.mubr.f32.mxu0 0.0
        %876 = vmatmul.mubr.f32.gmra.mxu0 %v702
        %v877 = vpop.f32.mrf.mxu0
        %v878 = vadd.f32 %v690, %v877
        %v879 = vpop.f32.mrf.mxu0
        %v880 = vadd.f32 %v690, %v879
        %881 = vdwg.mxu0
        %vm882 = vcmask 1043456
        %v883 = vsel %vm882, %v437, -inf
        %v884 = vsel %vm882, %v439, -inf
        %v885 = vsel %vm882, %v508, -inf
        %v886 = vsel %vm882, %v510, -inf
        %v887 = vmax.f32 %v883, %v884
        %v888 = vmax.f32 %v885, %v886
        %v889 = vmax.f32 %v887, %v888
        %890 = vmax.xlane.f32.xlu0 %v889
        %v891 = vpop.xlane.xlu0 %890
        %v892 = vsub.f32 %v437, %v891
        %v893 = vsub.f32 %v439, %v891
        %v894 = vsub.f32 %v508, %v891
        %v895 = vsub.f32 %v510, %v891
        %v896 = vmul.f32 %v892, 1.442695
        %v897 = vpow.pop %v896
        %v898 = vmul.f32 %v893, 1.442695
        %v899 = vpow.pop %v898
        %v900 = vmul.f32 %v894, 1.442695
        %v901 = vpow.pop %v900
        %v902 = vmul.f32 %v895, 1.442695
        %v903 = vpow.pop %v902
        %v904 = vsel %vm882, %v897, 0.0
        %v905 = vsel %vm882, %v899, 0.0
        %v906 = vadd.f32 %v904, %v905
        %v907 = vsel %vm882, %v901, 0.0
        %v908 = vadd.f32 %v906, %v907
        %v909 = vsel %vm882, %v903, 0.0
        %v910 = vadd.f32 %v908, %v909
        %911 = vadd.xlane.f32.xlu0 %v910
        %v912 = vpop.xlane.xlu0 %911
        %v913 = vrcp.pop %v912
        %v914 = vmul.f32 %v897, %v913
        %v915 = vmul.f32 %v899, %v913
        %v916 = vmul.f32 %v901, %v913
        %v917 = vmul.f32 %v903, %v913
        %v918 = vsel %vm882, %v589, -inf
        %v919 = vrot.slane %v918, 4
        %v920 = vmax.f32 %v918, %v919
        %v921 = vrot.slane %v920, 2
        %v922 = vmax.f32 %v920, %v921
        %v923 = vrot.slane %v922, 1
        %v924 = vmax.f32 %v922, %v923
        %v925 = vsel %vm882, %v591, -inf
        %v926 = vrot.slane %v925, 4
        %v927 = vmax.f32 %v925, %v926
        %v928 = vrot.slane %v927, 2
        %v929 = vmax.f32 %v927, %v928
        %v930 = vrot.slane %v929, 1
        %v931 = vmax.f32 %v929, %v930
        %v932 = vsel %vm882, %v660, -inf
        %v933 = vrot.slane %v932, 4
        %v934 = vmax.f32 %v932, %v933
        %v935 = vrot.slane %v934, 2
        %v936 = vmax.f32 %v934, %v935
        %v937 = vrot.slane %v936, 1
        %v938 = vmax.f32 %v936, %v937
        %v939 = vsel %vm882, %v662, -inf
        %v940 = vrot.slane %v939, 4
        %v941 = vmax.f32 %v939, %v940
        %v942 = vrot.slane %v941, 2
        %v943 = vmax.f32 %v941, %v942
        %v944 = vrot.slane %v943, 1
        %v945 = vmax.f32 %v943, %v944
        %v946 = vsub.f32 %v589, %v924
        %v947 = vsub.f32 %v591, %v931
        %v948 = vsub.f32 %v660, %v938
        %v949 = vsub.f32 %v662, %v945
        %v950 = vmul.f32 %v946, 1.442695
        %v951 = vpow.pop %v950
        %v952 = vmul.f32 %v947, 1.442695
        %v953 = vpow.pop %v952
        %v954 = vmul.f32 %v948, 1.442695
        %v955 = vpow.pop %v954
        %v956 = vmul.f32 %v949, 1.442695
        %v957 = vpow.pop %v956
        %v958 = vsel %vm882, %v951, 0.0
        %v959 = vrot.slane %v958, 4
        %v960 = vadd.f32 %v958, %v959
        %v961 = vrot.slane %v960, 2
        %v962 = vadd.f32 %v960, %v961
        %v963 = vrot.slane %v962, 1
        %v964 = vadd.f32 %v962, %v963
        %v965 = vsel %vm882, %v953, 0.0
        %v966 = vrot.slane %v965, 4
        %v967 = vadd.f32 %v965, %v966
        %v968 = vrot.slane %v967, 2
        %v969 = vadd.f32 %v967, %v968
        %v970 = vrot.slane %v969, 1
        %v971 = vadd.f32 %v969, %v970
        %v972 = vsel %vm882, %v955, 0.0
        %v973 = vrot.slane %v972, 4
        %v974 = vadd.f32 %v972, %v973
        %v975 = vrot.slane %v974, 2
        %v976 = vadd.f32 %v974, %v975
        %v977 = vrot.slane %v976, 1
        %v978 = vadd.f32 %v976, %v977
        %v979 = vsel %vm882, %v957, 0.0
        %v980 = vrot.slane %v979, 4
        %v981 = vadd.f32 %v979, %v980
        %v982 = vrot.slane %v981, 2
        %v983 = vadd.f32 %v981, %v982
        %v984 = vrot.slane %v983, 1
        %v985 = vadd.f32 %v983, %v984
        %v986 = vrcp.pop %v964
        %v987 = vmul.f32 %v951, %v986
        %v988 = vrcp.pop %v971
        %v989 = vmul.f32 %v953, %v988
        %v990 = vrcp.pop %v978
        %v991 = vmul.f32 %v955, %v990
        %v992 = vrcp.pop %v985
        %v993 = vmul.f32 %v957, %v992
        %994 = vmatprep.subr.mxu0 0.0
        %995 = vmatpush1.xpose.msra.mxu0 0.0
        %996 = vmatprep.subr.mxu0 0.0
        %997 = vmatpush1.xpose.msra.mxu0 0.0
        %998 = vmatprep.subr.mxu0 0.0
        %999 = vmatpush1.xpose.msra.mxu0 0.0
        %1000 = vmatprep.subr.mxu0 0.0
        %1001 = vmatpush1.xpose.msra.mxu0 0.0
        %1002 = vmatprep.subr.mxu0 0.0
        %1003 = vmatpush1.xpose.msra.mxu0 0.0
        %1004 = vmatprep.subr.mxu0 0.0
        %1005 = vmatpush1.xpose.msra.mxu0 0.0
        %1006 = vmatprep.subr.mxu0 0.0
        %1007 = vmatpush1.xpose.msra.mxu0 0.0
        %1008 = vmatprep.subr.mxu0 0.0
        %1009 = vmatpush1.xpose.msra.mxu0 0.0
        %1010 = vmatprep.subr.mxu0 0.0
        %1011 = vmatpush1.xpose.msra.mxu0 0.0
        %1012 = vmatprep.subr.mxu0 0.0
        %1013 = vmatpush1.xpose.msra.mxu0 0.0
        %1014 = vmatprep.subr.mxu0 0.0
        %1015 = vmatpush1.xpose.msra.mxu0 0.0
        %1016 = vmatprep.subr.mxu0 0.0
        %1017 = vmatpush1.xpose.msra.mxu0 0.0
        %1018 = vmatprep.subr.mxu0 0.0
        %1019 = vmatpush1.xpose.msra.mxu0 0.0
        %1020 = vmatprep.subr.mxu0 0.0
        %1021 = vmatpush1.xpose.msra.mxu0 0.0
        %1022 = vmatprep.subr.mxu0 0.0
        %1023 = vmatpush1.xpose.msra.mxu0 0.0
        %1024 = vmatprep.subr.mxu0 %v915
        %1025 = vmatpush1.xpose.msra.mxu0 %v914
        %1026 = vmatprep.subr.mxu0 0.0
        %1027 = vmatpush2.xpose.msra.mxu0 0.0
        %1028 = vmatprep.subr.mxu0 0.0
        %1029 = vmatpush2.xpose.msra.mxu0 0.0
        %1030 = vmatprep.subr.mxu0 0.0
        %1031 = vmatpush2.xpose.msra.mxu0 0.0
        %1032 = vmatprep.subr.mxu0 0.0
        %1033 = vmatpush2.xpose.msra.mxu0 0.0
        %1034 = vmatprep.subr.mxu0 0.0
        %1035 = vmatpush2.xpose.msra.mxu0 0.0
        %1036 = vmatprep.subr.mxu0 0.0
        %1037 = vmatpush2.xpose.msra.mxu0 0.0
        %1038 = vmatprep.subr.mxu0 0.0
        %1039 = vmatpush2.xpose.msra.mxu0 0.0
        %1040 = vmatprep.subr.mxu0 0.0
        %1041 = vmatpush2.xpose.msra.mxu0 0.0
        %1042 = vmatprep.subr.mxu0 0.0
        %1043 = vmatpush2.xpose.msra.mxu0 0.0
        %1044 = vmatprep.subr.mxu0 0.0
        %1045 = vmatpush2.xpose.msra.mxu0 0.0
        %1046 = vmatprep.subr.mxu0 0.0
        %1047 = vmatpush2.xpose.msra.mxu0 0.0
        %1048 = vmatprep.subr.mxu0 0.0
        %1049 = vmatpush2.xpose.msra.mxu0 0.0
        %1050 = vmatprep.subr.mxu0 0.0
        %1051 = vmatpush2.xpose.msra.mxu0 0.0
        %1052 = vmatprep.subr.mxu0 0.0
        %1053 = vmatpush2.xpose.msra.mxu0 0.0
        %1054 = vmatprep.subr.mxu0 0.0
        %1055 = vmatpush2.xpose.msra.mxu0 0.0
        %1056 = vmatprep.subr.mxu0 0.0
        %1057 = vmatpush2.xpose.msra.mxu0 0.0
        %1058 = vmatprep.mubr.f32.mxu0 %v773
        %1059 = vmatmul.mubr.f32.gmra.mxu0 %v771
        %v1060 = vpop.f32.mrf.mxu0
        %v1061 = vadd.f32 0.0, %v1060
        %v1062 = vpop.f32.mrf.mxu0
        %1063 = vmatprep.mubr.f32.mxu0 %v779
        %1064 = vmatmul.mubr.f32.gmra.mxu0 %v777
        %v1065 = vpop.f32.mrf.mxu0
        %v1066 = vadd.f32 0.0, %v1065
        %v1067 = vpop.f32.mrf.mxu0
        %1068 = vdwg.mxu0
        %1069 = vmatprep.subr.mxu0 0.0
        %1070 = vmatpush1.xpose.msra.mxu0 0.0
        %1071 = vmatprep.subr.mxu0 0.0
        %1072 = vmatpush1.xpose.msra.mxu0 0.0
        %1073 = vmatprep.subr.mxu0 0.0
        %1074 = vmatpush1.xpose.msra.mxu0 0.0
        %1075 = vmatprep.subr.mxu0 0.0
        %1076 = vmatpush1.xpose.msra.mxu0 0.0
        %1077 = vmatprep.subr.mxu0 0.0
        %1078 = vmatpush1.xpose.msra.mxu0 0.0
        %1079 = vmatprep.subr.mxu0 0.0
        %1080 = vmatpush1.xpose.msra.mxu0 0.0
        %1081 = vmatprep.subr.mxu0 0.0
        %1082 = vmatpush1.xpose.msra.mxu0 0.0
        %1083 = vmatprep.subr.mxu0 0.0
        %1084 = vmatpush1.xpose.msra.mxu0 0.0
        %1085 = vmatprep.subr.mxu0 0.0
        %1086 = vmatpush1.xpose.msra.mxu0 0.0
        %1087 = vmatprep.subr.mxu0 0.0
        %1088 = vmatpush1.xpose.msra.mxu0 0.0
        %1089 = vmatprep.subr.mxu0 0.0
        %1090 = vmatpush1.xpose.msra.mxu0 0.0
        %1091 = vmatprep.subr.mxu0 0.0
        %1092 = vmatpush1.xpose.msra.mxu0 0.0
        %1093 = vmatprep.subr.mxu0 0.0
        %1094 = vmatpush1.xpose.msra.mxu0 0.0
        %1095 = vmatprep.subr.mxu0 0.0
        %1096 = vmatpush1.xpose.msra.mxu0 0.0
        %1097 = vmatprep.subr.mxu0 0.0
        %1098 = vmatpush1.xpose.msra.mxu0 0.0
        %1099 = vmatprep.subr.mxu0 %v917
        %1100 = vmatpush1.xpose.msra.mxu0 %v916
        %1101 = vmatprep.subr.mxu0 0.0
        %1102 = vmatpush2.xpose.msra.mxu0 0.0
        %1103 = vmatprep.subr.mxu0 0.0
        %1104 = vmatpush2.xpose.msra.mxu0 0.0
        %1105 = vmatprep.subr.mxu0 0.0
        %1106 = vmatpush2.xpose.msra.mxu0 0.0
        %1107 = vmatprep.subr.mxu0 0.0
        %1108 = vmatpush2.xpose.msra.mxu0 0.0
        %1109 = vmatprep.subr.mxu0 0.0
        %1110 = vmatpush2.xpose.msra.mxu0 0.0
        %1111 = vmatprep.subr.mxu0 0.0
        %1112 = vmatpush2.xpose.msra.mxu0 0.0
        %1113 = vmatprep.subr.mxu0 0.0
        %1114 = vmatpush2.xpose.msra.mxu0 0.0
        %1115 = vmatprep.subr.mxu0 0.0
        %1116 = vmatpush2.xpose.msra.mxu0 0.0
        %1117 = vmatprep.subr.mxu0 0.0
        %1118 = vmatpush2.xpose.msra.mxu0 0.0
        %1119 = vmatprep.subr.mxu0 0.0
        %1120 = vmatpush2.xpose.msra.mxu0 0.0
        %1121 = vmatprep.subr.mxu0 0.0
        %1122 = vmatpush2.xpose.msra.mxu0 0.0
        %1123 = vmatprep.subr.mxu0 0.0
        %1124 = vmatpush2.xpose.msra.mxu0 0.0
        %1125 = vmatprep.subr.mxu0 0.0
        %1126 = vmatpush2.xpose.msra.mxu0 0.0
        %1127 = vmatprep.subr.mxu0 0.0
        %1128 = vmatpush2.xpose.msra.mxu0 0.0
        %1129 = vmatprep.subr.mxu0 0.0
        %1130 = vmatpush2.xpose.msra.mxu0 0.0
        %1131 = vmatprep.subr.mxu0 0.0
        %1132 = vmatpush2.xpose.msra.mxu0 0.0
        %1133 = vmatprep.mubr.f32.mxu0 %v862
        %1134 = vmatmul.mubr.f32.gmra.mxu0 %v860
        %v1135 = vpop.f32.mrf.mxu0
        %v1136 = vadd.f32 %v1061, %v1135
        %v1137 = vpop.f32.mrf.mxu0
        %1138 = vmatprep.mubr.f32.mxu0 %v868
        %1139 = vmatmul.mubr.f32.gmra.mxu0 %v866
        %v1140 = vpop.f32.mrf.mxu0
        %v1141 = vadd.f32 %v1066, %v1140
        %v1142 = vpop.f32.mrf.mxu0
        %1143 = vdwg.mxu0
        %vm1144 = vcmask 31744
        %v1146 = vsel %vm1144, %v1136, 0
        %v1149 = vsel %vm1144, %v1141, 0
        %v1152 = vsel %vm882, %v987, 0
        %v1155 = vsel %vm882, %v989, 0
        %v1158 = vsel %vm882, %v991, 0
        %v1161 = vsel %vm882, %v993, 0
        %1163 = vmatprep.subr.mxu0 0.0
        %1164 = vmatpush1.msra.mxu0 0.0
        %1165 = vmatprep.subr.mxu0 0.0
        %1166 = vmatpush1.msra.mxu0 0.0
        %1167 = vmatprep.subr.mxu0 0.0
        %1168 = vmatpush1.msra.mxu0 0.0
        %1169 = vmatprep.subr.mxu0 0.0
        %1170 = vmatpush1.msra.mxu0 0.0
        %1171 = vmatprep.subr.mxu0 0.0
        %1172 = vmatpush1.msra.mxu0 0.0
        %1173 = vmatprep.subr.mxu0 0.0
        %1174 = vmatpush1.msra.mxu0 0.0
        %1175 = vmatprep.subr.mxu0 0.0
        %1176 = vmatpush1.msra.mxu0 0.0
        %1177 = vmatprep.subr.mxu0 0.0
        %1178 = vmatpush1.msra.mxu0 0.0
        %1179 = vmatprep.subr.mxu0 0.0
        %1180 = vmatpush1.msra.mxu0 0.0
        %1181 = vmatprep.subr.mxu0 0.0
        %1182 = vmatpush1.msra.mxu0 0.0
        %1183 = vmatprep.subr.mxu0 0.0
        %1184 = vmatpush1.msra.mxu0 0.0
        %1185 = vmatprep.subr.mxu0 0.0
        %1186 = vmatpush1.msra.mxu0 0.0
        %1187 = vmatprep.subr.mxu0 0.0
        %1188 = vmatpush1.msra.mxu0 0.0
        %1189 = vmatprep.subr.mxu0 0.0
        %1190 = vmatpush1.msra.mxu0 0.0
        %1191 = vmatprep.subr.mxu0 0.0
        %1192 = vmatpush1.msra.mxu0 0.0
        %1193 = vmatprep.subr.mxu0 %v1155
        %1194 = vmatpush1.msra.mxu0 %v1152
        %1195 = vmatprep.subr.mxu0 0.0
        %1196 = vmatpush2.msra.mxu0 0.0
        %1197 = vmatprep.subr.mxu0 0.0
        %1198 = vmatpush2.msra.mxu0 0.0
        %1199 = vmatprep.subr.mxu0 0.0
        %1200 = vmatpush2.msra.mxu0 0.0
        %1201 = vmatprep.subr.mxu0 0.0
        %1202 = vmatpush2.msra.mxu0 0.0
        %1203 = vmatprep.subr.mxu0 0.0
        %1204 = vmatpush2.msra.mxu0 0.0
        %1205 = vmatprep.subr.mxu0 0.0
        %1206 = vmatpush2.msra.mxu0 0.0
        %1207 = vmatprep.subr.mxu0 0.0
        %1208 = vmatpush2.msra.mxu0 0.0
        %1209 = vmatprep.subr.mxu0 0.0
        %1210 = vmatpush2.msra.mxu0 0.0
        %1211 = vmatprep.subr.mxu0 0.0
        %1212 = vmatpush2.msra.mxu0 0.0
        %1213 = vmatprep.subr.mxu0 0.0
        %1214 = vmatpush2.msra.mxu0 0.0
        %1215 = vmatprep.subr.mxu0 0.0
        %1216 = vmatpush2.msra.mxu0 0.0
        %1217 = vmatprep.subr.mxu0 0.0
        %1218 = vmatpush2.msra.mxu0 0.0
        %1219 = vmatprep.subr.mxu0 0.0
        %1220 = vmatpush2.msra.mxu0 0.0
        %1221 = vmatprep.subr.mxu0 0.0
        %1222 = vmatpush2.msra.mxu0 0.0
        %1223 = vmatprep.subr.mxu0 0.0
        %1224 = vmatpush2.msra.mxu0 0.0
        %1225 = vmatprep.subr.mxu0 0.0
        %1226 = vmatpush2.msra.mxu0 0.0
        %1227 = vmatprep.mubr.f32.mxu0 0.0
        %1228 = vmatmul.mubr.f32.gmra.mxu0 %v1146
        %v1229 = vpop.f32.mrf.mxu0
        %v1230 = vadd.f32 0.0, %v1229
        %v1231 = vpop.f32.mrf.mxu0
        %v1232 = vadd.f32 0.0, %v1231
        %1233 = vmatprep.mubr.f32.mxu0 0.0
        %1234 = vmatmul.mubr.f32.gmra.mxu0 %v1149
        %v1235 = vpop.f32.mrf.mxu0
        %v1236 = vadd.f32 0.0, %v1235
        %v1237 = vpop.f32.mrf.mxu0
        %v1238 = vadd.f32 0.0, %v1237
        %1239 = vdwg.mxu0
        %1240 = vmatprep.subr.mxu0 0.0
        %1241 = vmatpush1.msra.mxu0 0.0
        %1242 = vmatprep.subr.mxu0 0.0
        %1243 = vmatpush1.msra.mxu0 0.0
        %1244 = vmatprep.subr.mxu0 0.0
        %1245 = vmatpush1.msra.mxu0 0.0
        %1246 = vmatprep.subr.mxu0 0.0
        %1247 = vmatpush1.msra.mxu0 0.0
        %1248 = vmatprep.subr.mxu0 0.0
        %1249 = vmatpush1.msra.mxu0 0.0
        %1250 = vmatprep.subr.mxu0 0.0
        %1251 = vmatpush1.msra.mxu0 0.0
        %1252 = vmatprep.subr.mxu0 0.0
        %1253 = vmatpush1.msra.mxu0 0.0
        %1254 = vmatprep.subr.mxu0 0.0
        %1255 = vmatpush1.msra.mxu0 0.0
        %1256 = vmatprep.subr.mxu0 0.0
        %1257 = vmatpush1.msra.mxu0 0.0
        %1258 = vmatprep.subr.mxu0 0.0
        %1259 = vmatpush1.msra.mxu0 0.0
        %1260 = vmatprep.subr.mxu0 0.0
        %1261 = vmatpush1.msra.mxu0 0.0
        %1262 = vmatprep.subr.mxu0 0.0
        %1263 = vmatpush1.msra.mxu0 0.0
        %1264 = vmatprep.subr.mxu0 0.0
        %1265 = vmatpush1.msra.mxu0 0.0
        %1266 = vmatprep.subr.mxu0 0.0
        %1267 = vmatpush1.msra.mxu0 0.0
        %1268 = vmatprep.subr.mxu0 0.0
        %1269 = vmatpush1.msra.mxu0 0.0
        %1270 = vmatprep.subr.mxu0 %v1161
        %1271 = vmatpush1.msra.mxu0 %v1158
        %1272 = vmatprep.subr.mxu0 0.0
        %1273 = vmatpush2.msra.mxu0 0.0
        %1274 = vmatprep.subr.mxu0 0.0
        %1275 = vmatpush2.msra.mxu0 0.0
        %1276 = vmatprep.subr.mxu0 0.0
        %1277 = vmatpush2.msra.mxu0 0.0
        %1278 = vmatprep.subr.mxu0 0.0
        %1279 = vmatpush2.msra.mxu0 0.0
        %1280 = vmatprep.subr.mxu0 0.0
        %1281 = vmatpush2.msra.mxu0 0.0
        %1282 = vmatprep.subr.mxu0 0.0
        %1283 = vmatpush2.msra.mxu0 0.0
        %1284 = vmatprep.subr.mxu0 0.0
        %1285 = vmatpush2.msra.mxu0 0.0
        %1286 = vmatprep.subr.mxu0 0.0
        %1287 = vmatpush2.msra.mxu0 0.0
        %1288 = vmatprep.subr.mxu0 0.0
        %1289 = vmatpush2.msra.mxu0 0.0
        %1290 = vmatprep.subr.mxu0 0.0
        %1291 = vmatpush2.msra.mxu0 0.0
        %1292 = vmatprep.subr.mxu0 0.0
        %1293 = vmatpush2.msra.mxu0 0.0
        %1294 = vmatprep.subr.mxu0 0.0
        %1295 = vmatpush2.msra.mxu0 0.0
        %1296 = vmatprep.subr.mxu0 0.0
        %1297 = vmatpush2.msra.mxu0 0.0
        %1298 = vmatprep.subr.mxu0 0.0
        %1299 = vmatpush2.msra.mxu0 0.0
        %1300 = vmatprep.subr.mxu0 0.0
        %1301 = vmatpush2.msra.mxu0 0.0
        %1302 = vmatprep.subr.mxu0 0.0
        %1303 = vmatpush2.msra.mxu0 0.0
        %1304 = vmatprep.mubr.f32.mxu0 0.0
        %1305 = vmatmul.mubr.f32.gmra.mxu0 %v1146
        %v1306 = vpop.f32.mrf.mxu0
        %v1307 = vadd.f32 0.0, %v1306
        %v1308 = vpop.f32.mrf.mxu0
        %v1309 = vadd.f32 0.0, %v1308
        %1310 = vmatprep.mubr.f32.mxu0 0.0
        %1311 = vmatmul.mubr.f32.gmra.mxu0 %v1149
        %v1312 = vpop.f32.mrf.mxu0
        %v1313 = vadd.f32 0.0, %v1312
        %v1314 = vpop.f32.mrf.mxu0
        %v1315 = vadd.f32 0.0, %v1314
        %1316 = vdwg.mxu0
        %vm1317 = vcmask 1047556
        %v1318 = vsel %vm1317, %v437, -inf
        %v1319 = vsel %vm1317, %v439, -inf
        %v1320 = vsel %vm1317, %v508, -inf
        %v1321 = vsel %vm1317, %v510, -inf
        %v1322 = vmax.f32 %v1318, %v1319
        %v1323 = vmax.f32 %v1320, %v1321
        %v1324 = vmax.f32 %v1322, %v1323
        %1325 = vmax.xlane.f32.xlu0 %v1324
        %v1326 = vpop.xlane.xlu0 %1325
        %v1327 = vsub.f32 %v437, %v1326
        %v1328 = vsub.f32 %v439, %v1326
        %v1329 = vsub.f32 %v508, %v1326
        %v1330 = vsub.f32 %v510, %v1326
        %v1331 = vmul.f32 %v1327, 1.442695
        %v1332 = vpow.pop %v1331
        %v1333 = vmul.f32 %v1328, 1.442695
        %v1334 = vpow.pop %v1333
        %v1335 = vmul.f32 %v1329, 1.442695
        %v1336 = vpow.pop %v1335
        %v1337 = vmul.f32 %v1330, 1.442695
        %v1338 = vpow.pop %v1337
        %v1339 = vsel %vm1317, %v1332, 0.0
        %v1340 = vsel %vm1317, %v1334, 0.0
        %v1341 = vadd.f32 %v1339, %v1340
        %v1342 = vsel %vm1317, %v1336, 0.0
        %v1343 = vadd.f32 %v1341, %v1342
        %v1344 = vsel %vm1317, %v1338, 0.0
        %v1345 = vadd.f32 %v1343, %v1344
        %1346 = vadd.xlane.f32.xlu0 %v1345
        %v1347 = vpop.xlane.xlu0 %1346
        %v1348 = vrcp.pop %v1347
        %v1349 = vmul.f32 %v1332, %v1348
        %v1350 = vmul.f32 %v1334, %v1348
        %v1351 = vmul.f32 %v1336, %v1348
        %v1352 = vmul.f32 %v1338, %v1348
        %v1353 = vsel %vm1317, %v589, -inf
        %v1354 = vrot.slane %v1353, 4
        %v1355 = vmax.f32 %v1353, %v1354
        %v1356 = vrot.slane %v1355, 2
        %v1357 = vmax.f32 %v1355, %v1356
        %v1358 = vrot.slane %v1357, 1
        %v1359 = vmax.f32 %v1357, %v1358
        %v1360 = vsel %vm1317, %v591, -inf
        %v1361 = vrot.slane %v1360, 4
        %v1362 = vmax.f32 %v1360, %v1361
        %v1363 = vrot.slane %v1362, 2
        %v1364 = vmax.f32 %v1362, %v1363
        %v1365 = vrot.slane %v1364, 1
        %v1366 = vmax.f32 %v1364, %v1365
        %v1367 = vsel %vm1317, %v660, -inf
        %v1368 = vrot.slane %v1367, 4
        %v1369 = vmax.f32 %v1367, %v1368
        %v1370 = vrot.slane %v1369, 2
        %v1371 = vmax.f32 %v1369, %v1370
        %v1372 = vrot.slane %v1371, 1
        %v1373 = vmax.f32 %v1371, %v1372
        %v1374 = vsel %vm1317, %v662, -inf
        %v1375 = vrot.slane %v1374, 4
        %v1376 = vmax.f32 %v1374, %v1375
        %v1377 = vrot.slane %v1376, 2
        %v1378 = vmax.f32 %v1376, %v1377
        %v1379 = vrot.slane %v1378, 1
        %v1380 = vmax.f32 %v1378, %v1379
        %v1381 = vsub.f32 %v589, %v1359
        %v1382 = vsub.f32 %v591, %v1366
        %v1383 = vsub.f32 %v660, %v1373
        %v1384 = vsub.f32 %v662, %v1380
        %v1385 = vmul.f32 %v1381, 1.442695
        %v1386 = vpow.pop %v1385
        %v1387 = vmul.f32 %v1382, 1.442695
        %v1388 = vpow.pop %v1387
        %v1389 = vmul.f32 %v1383, 1.442695
        %v1390 = vpow.pop %v1389
        %v1391 = vmul.f32 %v1384, 1.442695
        %v1392 = vpow.pop %v1391
        %v1397 = vrot.slane %v1386, 4
        %v1398 = vrot.slane %v1388, 4
        %v1399 = vrot.slane %v1390, 4
        %v1400 = vrot.slane %v1392, 4
        %v1405 = vsel %vm882, %v1397, 0.0
        %v1406 = vrot.slane %v1405, 4
        %v1407 = vadd.f32 %v1405, %v1406
        %v1408 = vrot.slane %v1407, 2
        %v1409 = vadd.f32 %v1407, %v1408
        %v1410 = vrot.slane %v1409, 1
        %v1411 = vadd.f32 %v1409, %v1410
        %v1412 = vsel %vm882, %v1398, 0.0
        %v1413 = vrot.slane %v1412, 4
        %v1414 = vadd.f32 %v1412, %v1413
        %v1415 = vrot.slane %v1414, 2
        %v1416 = vadd.f32 %v1414, %v1415
        %v1417 = vrot.slane %v1416, 1
        %v1418 = vadd.f32 %v1416, %v1417
        %v1419 = vsel %vm882, %v1399, 0.0
        %v1420 = vrot.slane %v1419, 4
        %v1421 = vadd.f32 %v1419, %v1420
        %v1422 = vrot.slane %v1421, 2
        %v1423 = vadd.f32 %v1421, %v1422
        %v1424 = vrot.slane %v1423, 1
        %v1425 = vadd.f32 %v1423, %v1424
        %v1426 = vsel %vm882, %v1400, 0.0
        %v1427 = vrot.slane %v1426, 4
        %v1428 = vadd.f32 %v1426, %v1427
        %v1429 = vrot.slane %v1428, 2
        %v1430 = vadd.f32 %v1428, %v1429
        %v1431 = vrot.slane %v1430, 1
        %v1432 = vadd.f32 %v1430, %v1431
        %v1433 = vrcp.pop %v1411
        %v1434 = vmul.f32 %v1386, %v1433
        %v1435 = vrcp.pop %v1418
        %v1436 = vmul.f32 %v1388, %v1435
        %v1437 = vrcp.pop %v1425
        %v1438 = vmul.f32 %v1390, %v1437
        %v1439 = vrcp.pop %v1432
        %v1440 = vmul.f32 %v1392, %v1439
        %v1445 = vrot.slane %v1349, 4
        %v1446 = vrot.slane %v1350, 4
        %v1447 = vrot.slane %v1351, 4
        %v1448 = vrot.slane %v1352, 4
        %1453 = vmatprep.subr.mxu0 0.0
        %1454 = vmatpush1.xpose.msra.mxu0 0.0
        %1455 = vmatprep.subr.mxu0 0.0
        %1456 = vmatpush1.xpose.msra.mxu0 0.0
        %1457 = vmatprep.subr.mxu0 0.0
        %1458 = vmatpush1.xpose.msra.mxu0 0.0
        %1459 = vmatprep.subr.mxu0 0.0
        %1460 = vmatpush1.xpose.msra.mxu0 0.0
        %1461 = vmatprep.subr.mxu0 0.0
        %1462 = vmatpush1.xpose.msra.mxu0 0.0
        %1463 = vmatprep.subr.mxu0 0.0
        %1464 = vmatpush1.xpose.msra.mxu0 0.0
        %1465 = vmatprep.subr.mxu0 0.0
        %1466 = vmatpush1.xpose.msra.mxu0 0.0
        %1467 = vmatprep.subr.mxu0 0.0
        %1468 = vmatpush1.xpose.msra.mxu0 0.0
        %1469 = vmatprep.subr.mxu0 0.0
        %1470 = vmatpush1.xpose.msra.mxu0 0.0
        %1471 = vmatprep.subr.mxu0 0.0
        %1472 = vmatpush1.xpose.msra.mxu0 0.0
        %1473 = vmatprep.subr.mxu0 0.0
        %1474 = vmatpush1.xpose.msra.mxu0 0.0
        %1475 = vmatprep.subr.mxu0 0.0
        %1476 = vmatpush1.xpose.msra.mxu0 0.0
        %1477 = vmatprep.subr.mxu0 0.0
        %1478 = vmatpush1.xpose.msra.mxu0 0.0
        %1479 = vmatprep.subr.mxu0 0.0
        %1480 = vmatpush1.xpose.msra.mxu0 0.0
        %1481 = vmatprep.subr.mxu0 0.0
        %1482 = vmatpush1.xpose.msra.mxu0 0.0
        %1483 = vmatprep.subr.mxu0 %v1446
        %1484 = vmatpush1.xpose.msra.mxu0 %v1445
        %1485 = vmatprep.subr.mxu0 0.0
        %1486 = vmatpush2.xpose.msra.mxu0 0.0
        %1487 = vmatprep.subr.mxu0 0.0
        %1488 = vmatpush2.xpose.msra.mxu0 0.0
        %1489 = vmatprep.subr.mxu0 0.0
        %1490 = vmatpush2.xpose.msra.mxu0 0.0
        %1491 = vmatprep.subr.mxu0 0.0
        %1492 = vmatpush2.xpose.msra.mxu0 0.0
        %1493 = vmatprep.subr.mxu0 0.0
        %1494 = vmatpush2.xpose.msra.mxu0 0.0
        %1495 = vmatprep.subr.mxu0 0.0
        %1496 = vmatpush2.xpose.msra.mxu0 0.0
        %1497 = vmatprep.subr.mxu0 0.0
        %1498 = vmatpush2.xpose.msra.mxu0 0.0
        %1499 = vmatprep.subr.mxu0 0.0
        %1500 = vmatpush2.xpose.msra.mxu0 0.0
        %1501 = vmatprep.subr.mxu0 0.0
        %1502 = vmatpush2.xpose.msra.mxu0 0.0
        %1503 = vmatprep.subr.mxu0 0.0
        %1504 = vmatpush2.xpose.msra.mxu0 0.0
        %1505 = vmatprep.subr.mxu0 0.0
        %1506 = vmatpush2.xpose.msra.mxu0 0.0
        %1507 = vmatprep.subr.mxu0 0.0
        %1508 = vmatpush2.xpose.msra.mxu0 0.0
        %1509 = vmatprep.subr.mxu0 0.0
        %1510 = vmatpush2.xpose.msra.mxu0 0.0
        %1511 = vmatprep.subr.mxu0 0.0
        %1512 = vmatpush2.xpose.msra.mxu0 0.0
        %1513 = vmatprep.subr.mxu0 0.0
        %1514 = vmatpush2.xpose.msra.mxu0 0.0
        %1515 = vmatprep.subr.mxu0 0.0
        %1516 = vmatpush2.xpose.msra.mxu0 0.0
        %1517 = vmatprep.mubr.f32.mxu0 %v785
        %1518 = vmatmul.mubr.f32.gmra.mxu0 %v783
        %v1519 = vpop.f32.mrf.mxu0
        %v1520 = vadd.f32 0.0, %v1519
        %v1521 = vpop.f32.mrf.mxu0
        %1522 = vmatprep.mubr.f32.mxu0 %v791
        %1523 = vmatmul.mubr.f32.gmra.mxu0 %v789
        %v1524 = vpop.f32.mrf.mxu0
        %v1525 = vadd.f32 0.0, %v1524
        %v1526 = vpop.f32.mrf.mxu0
        %1527 = vdwg.mxu0
        %1528 = vmatprep.subr.mxu0 0.0
        %1529 = vmatpush1.xpose.msra.mxu0 0.0
        %1530 = vmatprep.subr.mxu0 0.0
        %1531 = vmatpush1.xpose.msra.mxu0 0.0
        %1532 = vmatprep.subr.mxu0 0.0
        %1533 = vmatpush1.xpose.msra.mxu0 0.0
        %1534 = vmatprep.subr.mxu0 0.0
        %1535 = vmatpush1.xpose.msra.mxu0 0.0
        %1536 = vmatprep.subr.mxu0 0.0
        %1537 = vmatpush1.xpose.msra.mxu0 0.0
        %1538 = vmatprep.subr.mxu0 0.0
        %1539 = vmatpush1.xpose.msra.mxu0 0.0
        %1540 = vmatprep.subr.mxu0 0.0
        %1541 = vmatpush1.xpose.msra.mxu0 0.0
        %1542 = vmatprep.subr.mxu0 0.0
        %1543 = vmatpush1.xpose.msra.mxu0 0.0
        %1544 = vmatprep.subr.mxu0 0.0
        %1545 = vmatpush1.xpose.msra.mxu0 0.0
        %1546 = vmatprep.subr.mxu0 0.0
        %1547 = vmatpush1.xpose.msra.mxu0 0.0
        %1548 = vmatprep.subr.mxu0 0.0
        %1549 = vmatpush1.xpose.msra.mxu0 0.0
        %1550 = vmatprep.subr.mxu0 0.0
        %1551 = vmatpush1.xpose.msra.mxu0 0.0
        %1552 = vmatprep.subr.mxu0 0.0
        %1553 = vmatpush1.xpose.msra.mxu0 0.0
        %1554 = vmatprep.subr.mxu0 0.0
        %1555 = vmatpush1.xpose.msra.mxu0 0.0
        %1556 = vmatprep.subr.mxu0 0.0
        %1557 = vmatpush1.xpose.msra.mxu0 0.0
        %1558 = vmatprep.subr.mxu0 %v1448
        %1559 = vmatpush1.xpose.msra.mxu0 %v1447
        %1560 = vmatprep.subr.mxu0 0.0
        %1561 = vmatpush2.xpose.msra.mxu0 0.0
        %1562 = vmatprep.subr.mxu0 0.0
        %1563 = vmatpush2.xpose.msra.mxu0 0.0
        %1564 = vmatprep.subr.mxu0 0.0
        %1565 = vmatpush2.xpose.msra.mxu0 0.0
        %1566 = vmatprep.subr.mxu0 0.0
        %1567 = vmatpush2.xpose.msra.mxu0 0.0
        %1568 = vmatprep.subr.mxu0 0.0
        %1569 = vmatpush2.xpose.msra.mxu0 0.0
        %1570 = vmatprep.subr.mxu0 0.0
        %1571 = vmatpush2.xpose.msra.mxu0 0.0
        %1572 = vmatprep.subr.mxu0 0.0
        %1573 = vmatpush2.xpose.msra.mxu0 0.0
        %1574 = vmatprep.subr.mxu0 0.0
        %1575 = vmatpush2.xpose.msra.mxu0 0.0
        %1576 = vmatprep.subr.mxu0 0.0
        %1577 = vmatpush2.xpose.msra.mxu0 0.0
        %1578 = vmatprep.subr.mxu0 0.0
        %1579 = vmatpush2.xpose.msra.mxu0 0.0
        %1580 = vmatprep.subr.mxu0 0.0
        %1581 = vmatpush2.xpose.msra.mxu0 0.0
        %1582 = vmatprep.subr.mxu0 0.0
        %1583 = vmatpush2.xpose.msra.mxu0 0.0
        %1584 = vmatprep.subr.mxu0 0.0
        %1585 = vmatpush2.xpose.msra.mxu0 0.0
        %1586 = vmatprep.subr.mxu0 0.0
        %1587 = vmatpush2.xpose.msra.mxu0 0.0
        %1588 = vmatprep.subr.mxu0 0.0
        %1589 = vmatpush2.xpose.msra.mxu0 0.0
        %1590 = vmatprep.subr.mxu0 0.0
        %1591 = vmatpush2.xpose.msra.mxu0 0.0
        %1592 = vmatprep.mubr.f32.mxu0 %v874
        %1593 = vmatmul.mubr.f32.gmra.mxu0 %v872
        %v1594 = vpop.f32.mrf.mxu0
        %v1595 = vadd.f32 %v1520, %v1594
        %v1596 = vpop.f32.mrf.mxu0
        %1597 = vmatprep.mubr.f32.mxu0 %v880
        %1598 = vmatmul.mubr.f32.gmra.mxu0 %v878
        %v1599 = vpop.f32.mrf.mxu0
        %v1600 = vadd.f32 %v1525, %v1599
        %v1601 = vpop.f32.mrf.mxu0
        %1602 = vdwg.mxu0
        %v1607 = vrot.slane %v1434, 4
        %v1608 = vrot.slane %v1436, 4
        %v1609 = vrot.slane %v1438, 4
        %v1610 = vrot.slane %v1440, 4
        %v1612 = vsel %vm1144, %v1595, 0
        %v1615 = vsel %vm1144, %v1600, 0
        %v1617 = vsel %vm882, %v1607, 0
        %v1619 = vsel %vm882, %v1608, 0
        %v1621 = vsel %vm882, %v1609, 0
        %v1623 = vsel %vm882, %v1610, 0
        %1625 = vmatprep.subr.mxu0 0.0
        %1626 = vmatpush1.msra.mxu0 0.0
        %1627 = vmatprep.subr.mxu0 0.0
        %1628 = vmatpush1.msra.mxu0 0.0
        %1629 = vmatprep.subr.mxu0 0.0
        %1630 = vmatpush1.msra.mxu0 0.0
        %1631 = vmatprep.subr.mxu0 0.0
        %1632 = vmatpush1.msra.mxu0 0.0
        %1633 = vmatprep.subr.mxu0 0.0
        %1634 = vmatpush1.msra.mxu0 0.0
        %1635 = vmatprep.subr.mxu0 0.0
        %1636 = vmatpush1.msra.mxu0 0.0
        %1637 = vmatprep.subr.mxu0 0.0
        %1638 = vmatpush1.msra.mxu0 0.0
        %1639 = vmatprep.subr.mxu0 0.0
        %1640 = vmatpush1.msra.mxu0 0.0
        %1641 = vmatprep.subr.mxu0 0.0
        %1642 = vmatpush1.msra.mxu0 0.0
        %1643 = vmatprep.subr.mxu0 0.0
        %1644 = vmatpush1.msra.mxu0 0.0
        %1645 = vmatprep.subr.mxu0 0.0
        %1646 = vmatpush1.msra.mxu0 0.0
        %1647 = vmatprep.subr.mxu0 0.0
        %1648 = vmatpush1.msra.mxu0 0.0
        %1649 = vmatprep.subr.mxu0 0.0
        %1650 = vmatpush1.msra.mxu0 0.0
        %1651 = vmatprep.subr.mxu0 0.0
        %1652 = vmatpush1.msra.mxu0 0.0
        %1653 = vmatprep.subr.mxu0 0.0
        %1654 = vmatpush1.msra.mxu0 0.0
        %1655 = vmatprep.subr.mxu0 %v1619
        %1656 = vmatpush1.msra.mxu0 %v1617
        %1657 = vmatprep.subr.mxu0 0.0
        %1658 = vmatpush2.msra.mxu0 0.0
        %1659 = vmatprep.subr.mxu0 0.0
        %1660 = vmatpush2.msra.mxu0 0.0
        %1661 = vmatprep.subr.mxu0 0.0
        %1662 = vmatpush2.msra.mxu0 0.0
        %1663 = vmatprep.subr.mxu0 0.0
        %1664 = vmatpush2.msra.mxu0 0.0
        %1665 = vmatprep.subr.mxu0 0.0
        %1666 = vmatpush2.msra.mxu0 0.0
        %1667 = vmatprep.subr.mxu0 0.0
        %1668 = vmatpush2.msra.mxu0 0.0
        %1669 = vmatprep.subr.mxu0 0.0
        %1670 = vmatpush2.msra.mxu0 0.0
        %1671 = vmatprep.subr.mxu0 0.0
        %1672 = vmatpush2.msra.mxu0 0.0
        %1673 = vmatprep.subr.mxu0 0.0
        %1674 = vmatpush2.msra.mxu0 0.0
        %1675 = vmatprep.subr.mxu0 0.0
        %1676 = vmatpush2.msra.mxu0 0.0
        %1677 = vmatprep.subr.mxu0 0.0
        %1678 = vmatpush2.msra.mxu0 0.0
        %1679 = vmatprep.subr.mxu0 0.0
        %1680 = vmatpush2.msra.mxu0 0.0
        %1681 = vmatprep.subr.mxu0 0.0
        %1682 = vmatpush2.msra.mxu0 0.0
        %1683 = vmatprep.subr.mxu0 0.0
        %1684 = vmatpush2.msra.mxu0 0.0
        %1685 = vmatprep.subr.mxu0 0.0
        %1686 = vmatpush2.msra.mxu0 0.0
        %1687 = vmatprep.subr.mxu0 0.0
        %1688 = vmatpush2.msra.mxu0 0.0
        %1689 = vmatprep.mubr.f32.mxu0 0.0
        %1690 = vmatmul.mubr.f32.gmra.mxu0 %v1612
        %v1691 = vpop.f32.mrf.mxu0
        %v1692 = vadd.f32 0.0, %v1691
        %v1693 = vpop.f32.mrf.mxu0
        %v1694 = vadd.f32 0.0, %v1693
        %1695 = vmatprep.mubr.f32.mxu0 0.0
        %1696 = vmatmul.mubr.f32.gmra.mxu0 %v1615
        %v1697 = vpop.f32.mrf.mxu0
        %v1698 = vadd.f32 0.0, %v1697
        %v1699 = vpop.f32.mrf.mxu0
        %v1700 = vadd.f32 0.0, %v1699
        %1701 = vdwg.mxu0
        %1702 = vmatprep.subr.mxu0 0.0
        %1703 = vmatpush1.msra.mxu0 0.0
        %1704 = vmatprep.subr.mxu0 0.0
        %1705 = vmatpush1.msra.mxu0 0.0
        %1706 = vmatprep.subr.mxu0 0.0
        %1707 = vmatpush1.msra.mxu0 0.0
        %1708 = vmatprep.subr.mxu0 0.0
        %1709 = vmatpush1.msra.mxu0 0.0
        %1710 = vmatprep.subr.mxu0 0.0
        %1711 = vmatpush1.msra.mxu0 0.0
        %1712 = vmatprep.subr.mxu0 0.0
        %1713 = vmatpush1.msra.mxu0 0.0
        %1714 = vmatprep.subr.mxu0 0.0
        %1715 = vmatpush1.msra.mxu0 0.0
        %1716 = vmatprep.subr.mxu0 0.0
        %1717 = vmatpush1.msra.mxu0 0.0
        %1718 = vmatprep.subr.mxu0 0.0
        %1719 = vmatpush1.msra.mxu0 0.0
        %1720 = vmatprep.subr.mxu0 0.0
        %1721 = vmatpush1.msra.mxu0 0.0
        %1722 = vmatprep.subr.mxu0 0.0
        %1723 = vmatpush1.msra.mxu0 0.0
        %1724 = vmatprep.subr.mxu0 0.0
        %1725 = vmatpush1.msra.mxu0 0.0
        %1726 = vmatprep.subr.mxu0 0.0
        %1727 = vmatpush1.msra.mxu0 0.0
        %1728 = vmatprep.subr.mxu0 0.0
        %1729 = vmatpush1.msra.mxu0 0.0
        %1730 = vmatprep.subr.mxu0 0.0
        %1731 = vmatpush1.msra.mxu0 0.0
        %1732 = vmatprep.subr.mxu0 %v1623
        %1733 = vmatpush1.msra.mxu0 %v1621
        %1734 = vmatprep.subr.mxu0 0.0
        %1735 = vmatpush2.msra.mxu0 0.0
        %1736 = vmatprep.subr.mxu0 0.0
        %1737 = vmatpush2.msra.mxu0 0.0
        %1738 = vmatprep.subr.mxu0 0.0
        %1739 = vmatpush2.msra.mxu0 0.0
        %1740 = vmatprep.subr.mxu0 0.0
        %1741 = vmatpush2.msra.mxu0 0.0
        %1742 = vmatprep.subr.mxu0 0.0
        %1743 = vmatpush2.msra.mxu0 0.0
        %1744 = vmatprep.subr.mxu0 0.0
        %1745 = vmatpush2.msra.mxu0 0.0
        %1746 = vmatprep.subr.mxu0 0.0
        %1747 = vmatpush2.msra.mxu0 0.0
        %1748 = vmatprep.subr.mxu0 0.0
        %1749 = vmatpush2.msra.mxu0 0.0
        %1750 = vmatprep.subr.mxu0 0.0
        %1751 = vmatpush2.msra.mxu0 0.0
        %1752 = vmatprep.subr.mxu0 0.0
        %1753 = vmatpush2.msra.mxu0 0.0
        %1754 = vmatprep.subr.mxu0 0.0
        %1755 = vmatpush2.msra.mxu0 0.0
        %1756 = vmatprep.subr.mxu0 0.0
        %1757 = vmatpush2.msra.mxu0 0.0
        %1758 = vmatprep.subr.mxu0 0.0
        %1759 = vmatpush2.msra.mxu0 0.0
        %1760 = vmatprep.subr.mxu0 0.0
        %1761 = vmatpush2.msra.mxu0 0.0
        %1762 = vmatprep.subr.mxu0 0.0
        %1763 = vmatpush2.msra.mxu0 0.0
        %1764 = vmatprep.subr.mxu0 0.0
        %1765 = vmatpush2.msra.mxu0 0.0
        %1766 = vmatprep.mubr.f32.mxu0 0.0
        %1767 = vmatmul.mubr.f32.gmra.mxu0 %v1612
        %v1768 = vpop.f32.mrf.mxu0
        %v1769 = vadd.f32 0.0, %v1768
        %v1770 = vpop.f32.mrf.mxu0
        %v1771 = vadd.f32 0.0, %v1770
        %1772 = vmatprep.mubr.f32.mxu0 0.0
        %1773 = vmatmul.mubr.f32.gmra.mxu0 %v1615
        %v1774 = vpop.f32.mrf.mxu0
        %v1775 = vadd.f32 0.0, %v1774
        %v1776 = vpop.f32.mrf.mxu0
        %v1777 = vadd.f32 0.0, %v1776
        %1778 = vdwg.mxu0
        %v1779 = vld [vmem:[%s7] sm:$0xff]
        %v1780 = vld [vmem:[%s7 + $0x8] sm:$0xff]
        %v1781 = vld [vmem:[%s8] sm:$0xff]
        %v1782 = vld [vmem:[%s8 + $0x8] sm:$0xff]
        %1784 = vset.pattern.permute.xlu0 0
        %1785 = vperm.xlu0 %1784, %v1781
        %v1786 = vpop.permute.xlu0 %1785
        %1789 = vset.pattern.permute.xlu0 0
        %1790 = vperm.xlu0 %1789, %v1782
        %v1791 = vpop.permute.xlu0 %1790
        %vm1793 = vcmask 261120
        %v1795 = vsel %vm1793, %v1779, 0
        %v1798 = vsel %vm1793, %v1780, 0
        %1800 = vmatprep.subr.mxu0 0.0
        %1801 = vmatpush1.msra.mxu0 0.0
        %1802 = vmatprep.subr.mxu0 0.0
        %1803 = vmatpush1.msra.mxu0 0.0
        %1804 = vmatprep.subr.mxu0 0.0
        %1805 = vmatpush1.msra.mxu0 0.0
        %1806 = vmatprep.subr.mxu0 0.0
        %1807 = vmatpush1.msra.mxu0 0.0
        %1808 = vmatprep.subr.mxu0 0.0
        %1809 = vmatpush1.msra.mxu0 0.0
        %1810 = vmatprep.subr.mxu0 0.0
        %1811 = vmatpush1.msra.mxu0 0.0
        %1812 = vmatprep.subr.mxu0 0.0
        %1813 = vmatpush1.msra.mxu0 0.0
        %1814 = vmatprep.subr.mxu0 0.0
        %1815 = vmatpush1.msra.mxu0 0.0
        %1816 = vmatprep.subr.mxu0 0.0
        %1817 = vmatpush1.msra.mxu0 0.0
        %1818 = vmatprep.subr.mxu0 0.0
        %1819 = vmatpush1.msra.mxu0 0.0
        %1820 = vmatprep.subr.mxu0 0.0
        %1821 = vmatpush1.msra.mxu0 0.0
        %1822 = vmatprep.subr.mxu0 0.0
        %1823 = vmatpush1.msra.mxu0 0.0
        %1824 = vmatprep.subr.mxu0 %v1700
        %1825 = vmatpush1.msra.mxu0 %v1698
        %1826 = vmatprep.subr.mxu0 %v1694
        %1827 = vmatpush1.msra.mxu0 %v1692
        %1828 = vmatprep.subr.mxu0 %v1238
        %1829 = vmatpush1.msra.mxu0 %v1236
        %1830 = vmatprep.subr.mxu0 %v1232
        %1831 = vmatpush1.msra.mxu0 %v1230
        %1832 = vmatprep.subr.mxu0 0.0
        %1833 = vmatpush2.msra.mxu0 0.0
        %1834 = vmatprep.subr.mxu0 0.0
        %1835 = vmatpush2.msra.mxu0 0.0
        %1836 = vmatprep.subr.mxu0 0.0
        %1837 = vmatpush2.msra.mxu0 0.0
        %1838 = vmatprep.subr.mxu0 0.0
        %1839 = vmatpush2.msra.mxu0 0.0
        %1840 = vmatprep.subr.mxu0 0.0
        %1841 = vmatpush2.msra.mxu0 0.0
        %1842 = vmatprep.subr.mxu0 0.0
        %1843 = vmatpush2.msra.mxu0 0.0
        %1844 = vmatprep.subr.mxu0 0.0
        %1845 = vmatpush2.msra.mxu0 0.0
        %1846 = vmatprep.subr.mxu0 0.0
        %1847 = vmatpush2.msra.mxu0 0.0
        %1848 = vmatprep.subr.mxu0 0.0
        %1849 = vmatpush2.msra.mxu0 0.0
        %1850 = vmatprep.subr.mxu0 0.0
        %1851 = vmatpush2.msra.mxu0 0.0
        %1852 = vmatprep.subr.mxu0 0.0
        %1853 = vmatpush2.msra.mxu0 0.0
        %1854 = vmatprep.subr.mxu0 0.0
        %1855 = vmatpush2.msra.mxu0 0.0
        %1856 = vmatprep.subr.mxu0 0.0
        %1857 = vmatpush2.msra.mxu0 0.0
        %1858 = vmatprep.subr.mxu0 0.0
        %1859 = vmatpush2.msra.mxu0 0.0
        %1860 = vmatprep.subr.mxu0 0.0
        %1861 = vmatpush2.msra.mxu0 0.0
        %1862 = vmatprep.subr.mxu0 0.0
        %1863 = vmatpush2.msra.mxu0 0.0
        %1864 = vmatprep.mubr.f32.mxu0 0.0
        %1865 = vmatmul.mubr.f32.gmra.mxu0 %v1795
        %v1866 = vpop.f32.mrf.mxu0
        %v1867 = vadd.f32 %v1786, %v1866
        %v1868 = vpop.f32.mrf.mxu0
        %v1869 = vadd.f32 %v1786, %v1868
        %1870 = vmatprep.mubr.f32.mxu0 0.0
        %1871 = vmatmul.mubr.f32.gmra.mxu0 %v1798
        %v1872 = vpop.f32.mrf.mxu0
        %v1873 = vadd.f32 %v1791, %v1872
        %v1874 = vpop.f32.mrf.mxu0
        %v1875 = vadd.f32 %v1791, %v1874
        %1876 = vdwg.mxu0
        %1877 = vmatprep.subr.mxu0 0.0
        %1878 = vmatpush1.msra.mxu0 0.0
        %1879 = vmatprep.subr.mxu0 0.0
        %1880 = vmatpush1.msra.mxu0 0.0
        %1881 = vmatprep.subr.mxu0 0.0
        %1882 = vmatpush1.msra.mxu0 0.0
        %1883 = vmatprep.subr.mxu0 0.0
        %1884 = vmatpush1.msra.mxu0 0.0
        %1885 = vmatprep.subr.mxu0 0.0
        %1886 = vmatpush1.msra.mxu0 0.0
        %1887 = vmatprep.subr.mxu0 0.0
        %1888 = vmatpush1.msra.mxu0 0.0
        %1889 = vmatprep.subr.mxu0 0.0
        %1890 = vmatpush1.msra.mxu0 0.0
        %1891 = vmatprep.subr.mxu0 0.0
        %1892 = vmatpush1.msra.mxu0 0.0
        %1893 = vmatprep.subr.mxu0 0.0
        %1894 = vmatpush1.msra.mxu0 0.0
        %1895 = vmatprep.subr.mxu0 0.0
        %1896 = vmatpush1.msra.mxu0 0.0
        %1897 = vmatprep.subr.mxu0 0.0
        %1898 = vmatpush1.msra.mxu0 0.0
        %1899 = vmatprep.subr.mxu0 0.0
        %1900 = vmatpush1.msra.mxu0 0.0
        %1901 = vmatprep.subr.mxu0 %v1777
        %1902 = vmatpush1.msra.mxu0 %v1775
        %1903 = vmatprep.subr.mxu0 %v1771
        %1904 = vmatpush1.msra.mxu0 %v1769
        %1905 = vmatprep.subr.mxu0 %v1315
        %1906 = vmatpush1.msra.mxu0 %v1313
        %1907 = vmatprep.subr.mxu0 %v1309
        %1908 = vmatpush1.msra.mxu0 %v1307
        %1909 = vmatprep.subr.mxu0 0.0
        %1910 = vmatpush2.msra.mxu0 0.0
        %1911 = vmatprep.subr.mxu0 0.0
        %1912 = vmatpush2.msra.mxu0 0.0
        %1913 = vmatprep.subr.mxu0 0.0
        %1914 = vmatpush2.msra.mxu0 0.0
        %1915 = vmatprep.subr.mxu0 0.0
        %1916 = vmatpush2.msra.mxu0 0.0
        %1917 = vmatprep.subr.mxu0 0.0
        %1918 = vmatpush2.msra.mxu0 0.0
        %1919 = vmatprep.subr.mxu0 0.0
        %1920 = vmatpush2.msra.mxu0 0.0
        %1921 = vmatprep.subr.mxu0 0.0
        %1922 = vmatpush2.msra.mxu0 0.0
        %1923 = vmatprep.subr.mxu0 0.0
        %1924 = vmatpush2.msra.mxu0 0.0
        %1925 = vmatprep.subr.mxu0 0.0
        %1926 = vmatpush2.msra.mxu0 0.0
        %1927 = vmatprep.subr.mxu0 0.0
        %1928 = vmatpush2.msra.mxu0 0.0
        %1929 = vmatprep.subr.mxu0 0.0
        %1930 = vmatpush2.msra.mxu0 0.0
        %1931 = vmatprep.subr.mxu0 0.0
        %1932 = vmatpush2.msra.mxu0 0.0
        %1933 = vmatprep.subr.mxu0 0.0
        %1934 = vmatpush2.msra.mxu0 0.0
        %1935 = vmatprep.subr.mxu0 0.0
        %1936 = vmatpush2.msra.mxu0 0.0
        %1937 = vmatprep.subr.mxu0 0.0
        %1938 = vmatpush2.msra.mxu0 0.0
        %1939 = vmatprep.subr.mxu0 0.0
        %1940 = vmatpush2.msra.mxu0 0.0
        %1941 = vmatprep.mubr.f32.mxu0 0.0
        %1942 = vmatmul.mubr.f32.gmra.mxu0 %v1795
        %v1943 = vpop.f32.mrf.mxu0
        %v1944 = vadd.f32 %v1786, %v1943
        %v1945 = vpop.f32.mrf.mxu0
        %v1946 = vadd.f32 %v1786, %v1945
        %1947 = vmatprep.mubr.f32.mxu0 0.0
        %1948 = vmatmul.mubr.f32.gmra.mxu0 %v1798
        %v1949 = vpop.f32.mrf.mxu0
        %v1950 = vadd.f32 %v1791, %v1949
        %v1951 = vpop.f32.mrf.mxu0
        %v1952 = vadd.f32 %v1791, %v1951
        %1953 = vdwg.mxu0
        %v1954 = vadd.f32 %v1867, %v351
        %v1955 = vadd.f32 %v1869, %v352
        %v1956 = vadd.f32 %v1944, %v353
        %v1957 = vadd.f32 %v1946, %v354
        %v1958 = vadd.f32 %v1873, %v355
        %v1959 = vadd.f32 %v1875, %v356
        %v1960 = vadd.f32 %v1950, %v357
        %v1961 = vadd.f32 %v1952, %v358
        %1962 = vst [vmem:[%s350] sm:$0xff] %v1954
        %1963 = vst [vmem:[%s350 + $0x8] sm:$0xff] %v1955
        %1964 = vst [vmem:[%s350 + $0x10] sm:$0xff] %v1956
        %1965 = vst [vmem:[%s350 + $0x18] sm:$0xff] %v1957
        %1966 = vst [vmem:[%s350 + $0x20] sm:$0xff] %v1958
        %1967 = vst [vmem:[%s350 + $0x28] sm:$0xff] %v1959
        %1968 = vst [vmem:[%s350 + $0x30] sm:$0xff] %v1960
        %1969 = vst [vmem:[%s350 + $0x38] sm:$0xff] %v1961
        %s1970 = sand.u32 %s228, 1
        %s1971 = scalar_lea.sflag [#allocation4], %s1970
        %s1972 = sand.u32 %s228, 1
        %s1973 = smul.addr %s1972, 64
        %s1974 = scalar_lea.vmem [#allocation5], %s1973
        // Predicated region
        $region61: #{tpu_custom_call.1} parent=55 // pred_check
          %p1975 = pneg %p238
        $region62: #{tpu_custom_call.1} parent=55 // pred_check_branch
          %1977 = sbr.rel (%p1975) target = $region64
        $region63: #{tpu_custom_call.1} parent=55 // pred_region
          %s1979 = ssub.s32 1024, 1024
          %1980 = vsyncadd %s1971, %s1979
          %s1981 = smul.addr %s26, 8
          %s1982 = smul.addr %s1981, 128
          %s1983 = scalar_lea.hbm %s9, %s1982
          %s1984 = sshll.u32 %s1974, 4
          %s1985 = int_to_ptr.vmem [resolvable:$true] %s1984
          %1990 = dma.vmem_to_hbm [thread:$0]  %s1985, 1024, %s1983, %s1971, 512, 512, 32
        $region64: #{tpu_custom_call.1} parent=55 // pred_fallthru
          _
      $region56: #{tpu_custom_call.1} parent=5 // pred_fallthru
        _
      %p1991 = scmp.le.s32.totalorder 2, %s21
      // Predicated region
      $region65: #{tpu_custom_call.1} parent=5 // pred_check
        %p1992 = pneg %p1991
      $region66: #{tpu_custom_call.1} parent=5 // pred_check_branch
        %1994 = sbr.rel (%p1992) target = $region68
      $region67: #{tpu_custom_call.1} parent=5 // pred_region
        %s1995 = ssub.s32 %s21, 2
        // Predicated region
        $region69: #{tpu_custom_call.1} parent=67 // pred_check
          %p1996 = pneg %p244
        $region70: #{tpu_custom_call.1} parent=67 // pred_check_branch
          %1998 = sbr.rel (%p1996) target = $region72
        $region71: #{tpu_custom_call.1} parent=67 // pred_region
          %s1999 = sand.u32 %s229, 1
          %s2000 = scalar_lea.sflag [#allocation4], %s1999
          %s2001 = sand.u32 %s229, 1
          %s2002 = smul.addr %s2001, 64
          %s2003 = scalar_lea.vmem [#allocation5], %s2002
          %2004 = dma.done %s2000, 1024
        $region72: #{tpu_custom_call.1} parent=67 // pred_fallthru
          _
      $region68: #{tpu_custom_call.1} parent=5 // pred_fallthru
        _
    $region6: #{tpu_custom_call.1} parent=1 // loop_footer
      %s25 = sadd.s32 1, %s21
    $region7: #{tpu_custom_call.1} parent=1 // loop_footer_branch
      %20 = sbr.rel target = $region3
    $region8: #{tpu_custom_call.1} parent=1 // loop_exit
      _
    %2005 = vsyncpa [#allocation3], 1
    %s2006 = scalar_lea.sflag [#allocation3], 1
    %2007 = vsyncpa %s2006, 1
    %2008 = vsyncpa [#allocation4], 1
    %s2009 = scalar_lea.sflag [#allocation4], 1
    %2010 = vsyncpa %s2009, 1

</llo_original>
